<compile_context>
chip_gen: v7x
topology: tpu7x:2x2x1
jax: 0.10.0
libtpu: 0.0.40
codegen_flags: <defaults>
</compile_context>

<pallas_src>
import jax
import jax.numpy as jnp
from jax.experimental import pallas as pl
from jax.experimental.pallas import tpu as pltpu


def _round_up(x, m):
    return ((x + m - 1) // m) * m


def _sage_conv_kernel(idx_ref, node_x_ref, edge_x_ref,
                      wc_ref, wn_ref, we_ref, b_ref,
                      out_ref, xwn_sc, ewe_sc, acc_sc):
    f32 = jnp.float32
    t = pl.program_id(0)
    N, _ = acc_sc.shape
    Ex = ewe_sc.shape[0]
    TE = idx_ref.shape[1]

    # ---- t == 0: pre-apply the three linears (small-K matmuls) ------------
    @pl.when(t == 0)
    def _init():
        node_x = node_x_ref[...].astype(f32)           # [N, Cn]
        edge_x = edge_x_ref[...].astype(f32)           # [Ex, Ce]
        xwn_sc[...] = jnp.dot(node_x, wn_ref[...].astype(f32),
                              preferred_element_type=f32)     # [N, Co_pad]
        ewe_sc[...] = jnp.dot(edge_x, we_ref[...].astype(f32),
                              preferred_element_type=f32)     # [Ex, Co_pad]
        acc_sc[...] = (jnp.dot(node_x, wc_ref[...].astype(f32),
                               preferred_element_type=f32)
                       + b_ref[...].astype(f32))              # center + bias

    # ---- per-edge-tile gather + scatter (all one-hots share orientation) --
    idx = idx_ref[...]                                 # [4, TE] int32, lane-dense
    row = idx[0:1, :]                                  # [1, TE]
    col = idx[1:2, :]
    nei = idx[2:3, :]
    sci = idx[3:4, :]

    iota_n = jax.lax.broadcasted_iota(jnp.int32, (N, TE), 0)
    iota_e = iota_n if Ex == N else jax.lax.broadcasted_iota(
        jnp.int32, (Ex, TE), 0)

    # onehot[target, e] = (index[e] == target); padded edges -> all-zero cols.
    onehot_row = (iota_n == row).astype(f32)           # [N,  TE]
    onehot_col = (iota_n == col).astype(f32)           # [N,  TE]
    onehot_nei = (iota_e == nei).astype(f32)           # [Ex, TE]
    onehot_sci = (iota_n == sci).astype(f32)           # [N,  TE]

    # Gather via contraction over axis 0 (same pattern as the dv matmul in the
    # pallas flash-attention backward kernel): out[e, c] = xwn[row[e], c].
    contract0 = (((0,), (0,)), ((), ()))
    x_j_w = jax.lax.dot_general(onehot_row, xwn_sc[...], contract0,
                                preferred_element_type=f32)   # [TE, Co_pad]
    x_j1_w = jax.lax.dot_general(onehot_nei, ewe_sc[...], contract0,
                                 preferred_element_type=f32)  # [TE, Co_pad]

    # Scatter-sum into the (lane-dense) accumulator.
    acc_sc[...] += (jnp.dot(onehot_col, x_j_w, preferred_element_type=f32)
                    + jnp.dot(onehot_sci, x_j1_w, preferred_element_type=f32))

    # ---- last step: normalize + activation + store -------------------------
    @pl.when(t == pl.num_programs(0) - 1)
    def _finalize():
        out = acc_sc[...]
        # F.normalize(p=2, dim=1, eps=1e-12): rsqrt on EUP + multiply on VPU.
        # Padded output columns are exactly zero (zero-padded W / bias) so
        # they do not perturb the norm.
        sumsq = jnp.sum(out * out, axis=-1, keepdims=True)
        out = out * jax.lax.rsqrt(jnp.maximum(sumsq, 1e-24))
        # leaky_relu, negative_slope = 0.01
        out = jnp.where(out >= 0, out, 0.01 * out)
        out_ref[...] = out.astype(out_ref.dtype)


def sage_conv(node_x, edge_index, edge_x, node_edge_index,
              node_edge_scatter_index, params, *, edge_tile=256):
    """Pallas SageConv forward."""
    wc, bc, wn, bn, we, be = params

    if edge_index.size == 0:
        # TODO(synk): empty-graph branch of the original module (lin_center
        # only, no normalize / activation) kept as a trivial plain-JAX layer.
        return node_x @ wc + bc

    N, Cn = node_x.shape
    Ex, Ce = edge_x.shape
    Co = wc.shape[1]
    E = edge_index.shape[1]
    assert edge_tile % 128 == 0, "edge_tile must be a multiple of 128"

    # --- host-side padding (lane-dense output, zero-padded weight columns) --
    Co_pad = _round_up(Co, 128)

    def pad_w(w):
        return jnp.pad(w, ((0, 0), (0, Co_pad - Co))) if Co_pad != Co else w

    wc_p, wn_p, we_p = pad_w(wc), pad_w(wn), pad_w(we)
    b_all = pad_w(bc + bn + be)                       # [1, Co_pad]

    TE = edge_tile
    E_pad = _round_up(E, TE)
    pad = E_pad - E
    # Padded (dummy) edges get out-of-range indices -> all-zero one-hot
    # columns, so they contribute nothing to gather or scatter.
    idx = jnp.stack([
        jnp.pad(edge_index[0].astype(jnp.int32), (0, pad), constant_values=N),
        jnp.pad(edge_index[1].astype(jnp.int32), (0, pad), constant_values=N),
        jnp.pad(node_edge_index.astype(jnp.int32), (0, pad),
                constant_values=Ex),
        jnp.pad(node_edge_scatter_index.astype(jnp.int32), (0, pad),
                constant_values=N),
    ], axis=0)                                        # [4, E_pad], lane-dense

    grid = (E_pad // TE,)
    out_itemsize = jnp.dtype(node_x.dtype).itemsize

    # --- VMEM budget (bytes; x2 only for double-buffered pipelined blocks) --
    resident_blocks = 2 * 4 * (N * Cn + Ex * Ce
                               + (2 * Cn + Ce) * Co_pad + Co_pad)
    idx_blocks = 2 * 4 * 4 * TE
    out_blocks = 2 * out_itemsize * N * Co_pad
    scratch = 4 * Co_pad * (2 * N + Ex)
    onehots = 4 * TE * (3 * N + Ex)
    temps = 4 * 2 * TE * Co_pad
    need = int(1.3 * (resident_blocks + idx_blocks + out_blocks
                      + scratch + onehots + temps))
    try:
        cap = int(0.85 * pltpu.get_tpu_info().vmem_capacity_bytes)
    except Exception:          # fallback safe on every generation (v7x 64 MiB)
        cap = 48 * 2 ** 20
    vmem_limit = int(min(cap, max(need, 16 * 2 ** 20)))

    # --- cost estimate so XLA schedules surrounding ops around the call -----
    flops = (2 * E_pad * Co_pad * (3 * N + Ex)                 # gathers+scatters
             + 4 * N * Cn * Co_pad + 2 * Ex * Ce * Co_pad)     # weight pre-apply
    bytes_accessed = (4 * (N * Cn + Ex * Ce + (2 * Cn + Ce) * Co_pad + Co_pad
                           + 4 * E_pad)
                      + out_itemsize * N * Co_pad)
    cost = pl.CostEstimate(flops=int(flops), transcendentals=int(N),
                           bytes_accessed=int(bytes_accessed))

    out_pad = pl.pallas_call(
        _sage_conv_kernel,
        out_shape=jax.ShapeDtypeStruct((N, Co_pad), node_x.dtype),
        grid_spec=pltpu.PrefetchScalarGridSpec(
            num_scalar_prefetch=0,
            grid=grid,
            in_specs=[
                pl.BlockSpec((4, TE), lambda t: (0, t)),        # packed indices
                pl.BlockSpec((N, Cn), lambda t: (0, 0)),        # node_x
                pl.BlockSpec((Ex, Ce), lambda t: (0, 0)),       # edge_x
                pl.BlockSpec((Cn, Co_pad), lambda t: (0, 0)),   # Wc
                pl.BlockSpec((Cn, Co_pad), lambda t: (0, 0)),   # Wn
                pl.BlockSpec((Ce, Co_pad), lambda t: (0, 0)),   # We
                pl.BlockSpec((1, Co_pad), lambda t: (0, 0)),    # summed bias
            ],
            out_specs=pl.BlockSpec((N, Co_pad), lambda t: (0, 0)),
            scratch_shapes=[pltpu.VMEM((N, Co_pad), jnp.float32),   # node_x @ Wn
                            pltpu.VMEM((Ex, Co_pad), jnp.float32),  # edge_x @ We
                            pltpu.VMEM((N, Co_pad), jnp.float32)],  # accumulator
        ),
        compiler_params=pltpu.CompilerParams(
            dimension_semantics=("arbitrary",),
            vmem_limit_bytes=vmem_limit),
        cost_estimate=cost,
    )(idx, node_x, edge_x, wc_p, wn_p, we_p, b_all)

    return out_pad[:, :Co]


def _init_linear(key, cin, cout):
    """Deterministic nn.Linear-style init: weight stored as [cin, cout]."""
    kw, kb = jax.random.split(key)
    bound = 1.0 / jnp.sqrt(jnp.float32(cin))
    w = jax.random.uniform(kw, (cin, cout), jnp.float32, -bound, bound)
    b = jax.random.uniform(kb, (1, cout), jnp.float32, -bound, bound)
    return w, b


def _reference(node_x, edge_index, edge_x, nei, sci, params):
    """Pure-JAX reference (f32, highest-precision matmuls)."""
    wc, bc, wn, bn, we, be = params
    N = node_x.shape[0]
    row, col = edge_index[0], edge_index[1]
    x_j = node_x[row]
    x_j_1 = edge_x[nei]
    aggr = jax.ops.segment_sum(x_j, col, num_segments=N)
    aggr_1 = jax.ops.segment_sum(x_j_1, sci, num_segments=N)
    hp = jax.lax.Precision.HIGHEST
    out = (jnp.dot(node_x, wc, precision=hp) + bc
           + jnp.dot(aggr, wn, precision=hp) + bn
           + jnp.dot(aggr_1, we, precision=hp) + be)
    norm = jnp.linalg.norm(out, axis=1, keepdims=True)
    out = out / jnp.maximum(norm, 1e-12)
    return jnp.where(out >= 0, out, 0.01 * out)


if __name__ == "__main__":
    key = jax.random.PRNGKey(0)
    k1, k2, k3, k4, k5, k6, k7, k8, k9 = jax.random.split(key, 9)

    # Small synthetic graph.
    N, E = 16, 24          # nodes, edges (messages)
    Cn, Ce, Co = 8, 6, 32  # node feat, edge feat, out channels
    Ex = E                 # rows of the edge feature table

    node_x = jax.random.normal(k1, (N, Cn), jnp.float32)
    edge_x = jax.random.normal(k2, (Ex, Ce), jnp.float32)
    row = jax.random.randint(k3, (E,), 0, N, jnp.int32)
    col = jax.random.randint(k4, (E,), 0, N, jnp.int32)
    edge_index = jnp.stack([row, col], axis=0)                     # [2, E]
    node_edge_index = jax.random.randint(k5, (E,), 0, Ex, jnp.int32)
    node_edge_scatter_index = jax.random.randint(k6, (E,), 0, N, jnp.int32)

    # Parameters (lin_center_node, lin_neighbor_node, lin_neighbor_edge).
    wc, bc = _init_linear(k7, Cn, Co)
    wn, bn = _init_linear(k8, Cn, Co)
    we, be = _init_linear(k9, Ce, Co)
    params = (wc, bc, wn, bn, we, be)

    out = sage_conv(node_x, edge_index, edge_x, node_edge_index,
                    node_edge_scatter_index, params)
    out = jax.block_until_ready(out)

    ref = _reference(node_x, edge_index, edge_x, node_edge_index,
                     node_edge_scatter_index, params)
    assert out.shape == (N, Co)
    max_diff = float(jnp.max(jnp.abs(out - ref)))
    assert jnp.allclose(out, ref, atol=1e-3, rtol=1e-3), (
        "mismatch vs reference, max abs diff = %g" % max_diff)

    print("KERNEL_OK")
</pallas_src>

<mosaic_0001>
module attributes {stable_mosaic.version = 11 : i64} {
  func.func @_sage_conv_kernel(%arg0: i32, %arg1: memref<4x256xi32, #tpu.memory_space<vmem>>, %arg2: memref<16x8xf32, #tpu.memory_space<vmem>>, %arg3: memref<24x6xf32, #tpu.memory_space<vmem>>, %arg4: memref<8x128xf32, #tpu.memory_space<vmem>>, %arg5: memref<8x128xf32, #tpu.memory_space<vmem>>, %arg6: memref<6x128xf32, #tpu.memory_space<vmem>>, %arg7: memref<1x128xf32, #tpu.memory_space<vmem>>, %arg8: memref<16x128xf32, #tpu.memory_space<vmem>>, %arg9: memref<16x128xf32, #tpu.memory_space<vmem>>, %arg10: memref<24x128xf32, #tpu.memory_space<vmem>>, %arg11: memref<16x128xf32, #tpu.memory_space<vmem>>) attributes {dimension_semantics = [#tpu.dimension_semantics<arbitrary>], iteration_bounds = array<i64: 1>, scalar_prefetch = 0 : i64, scratch_operands = 3 : i64, tpu.core_type = #tpu.core_type<tc>, window_params = [{transform_indices = @transform_0, window_bounds = array<i64: 4, 256>}, {pipeline_mode = #tpu.pipeline_mode<synchronous>, transform_indices = @transform_1, window_bounds = array<i64: 16, 8>}, {pipeline_mode = #tpu.pipeline_mode<synchronous>, transform_indices = @transform_2, window_bounds = array<i64: 24, 6>}, {pipeline_mode = #tpu.pipeline_mode<synchronous>, transform_indices = @transform_3, window_bounds = array<i64: 8, 128>}, {pipeline_mode = #tpu.pipeline_mode<synchronous>, transform_indices = @transform_4, window_bounds = array<i64: 8, 128>}, {pipeline_mode = #tpu.pipeline_mode<synchronous>, transform_indices = @transform_5, window_bounds = array<i64: 6, 128>}, {pipeline_mode = #tpu.pipeline_mode<synchronous>, transform_indices = @transform_6, window_bounds = array<i64: 1, 128>}, {pipeline_mode = #tpu.pipeline_mode<synchronous>, transform_indices = @transform_7, window_bounds = array<i64: 16, 128>}]} {
    %c0_i32 = arith.constant 0 : i32
    %0 = arith.cmpi eq, %arg0, %c0_i32 : i32
    %1 = arith.extui %0 : i1 to i32
    %c0_i32_0 = arith.constant 0 : i32
    %2 = arith.cmpi ne, %1, %c0_i32_0 : i32
    scf.if %2 {
      %c0_15 = arith.constant 0 : index
      %c0_16 = arith.constant 0 : index
      %39 = vector.load %arg2[%c0_15, %c0_16] : memref<16x8xf32, #tpu.memory_space<vmem>>, vector<16x8xf32>
      %c0_17 = arith.constant 0 : index
      %c0_18 = arith.constant 0 : index
      %40 = vector.load %arg3[%c0_17, %c0_18] : memref<24x6xf32, #tpu.memory_space<vmem>>, vector<24x6xf32>
      %c0_19 = arith.constant 0 : index
      %c0_20 = arith.constant 0 : index
      %41 = vector.load %arg5[%c0_19, %c0_20] : memref<8x128xf32, #tpu.memory_space<vmem>>, vector<8x128xf32>
      %cst_21 = arith.constant dense<0.000000e+00> : vector<16x128xf32>
      %42 = tpu.matmul %39, %41, %cst_21 {dimension_numbers = #tpu.dot_dimension_numbers<[1], [0], [0], [1], [0, 0, 1, 1], [], []>} : vector<16x8xf32>, vector<8x128xf32>, vector<16x128xf32> -> vector<16x128xf32>
      %c0_22 = arith.constant 0 : index
      %c0_23 = arith.constant 0 : index
      %43 = vector.load %arg9[%c0_22, %c0_23] : memref<16x128xf32, #tpu.memory_space<vmem>>, vector<16x128xf32>
      tpu.vector_store %arg9[%c0_22, %c0_23], %42 {strides = array<i32>} : memref<16x128xf32, #tpu.memory_space<vmem>>, vector<16x128xf32>,
      %c0_24 = arith.constant 0 : index
      %c0_25 = arith.constant 0 : index
      %44 = vector.load %arg6[%c0_24, %c0_25] : memref<6x128xf32, #tpu.memory_space<vmem>>, vector<6x128xf32>
      %cst_26 = arith.constant dense<0.000000e+00> : vector<24x128xf32>
      %45 = tpu.matmul %40, %44, %cst_26 {dimension_numbers = #tpu.dot_dimension_numbers<[1], [0], [0], [1], [0, 0, 1, 1], [], []>} : vector<24x6xf32>, vector<6x128xf32>, vector<24x128xf32> -> vector<24x128xf32>
      %c0_27 = arith.constant 0 : index
      %c0_28 = arith.constant 0 : index
      %46 = vector.load %arg10[%c0_27, %c0_28] : memref<24x128xf32, #tpu.memory_space<vmem>>, vector<24x128xf32>
      tpu.vector_store %arg10[%c0_27, %c0_28], %45 {strides = array<i32>} : memref<24x128xf32, #tpu.memory_space<vmem>>, vector<24x128xf32>,
      %c0_29 = arith.constant 0 : index
      %c0_30 = arith.constant 0 : index
      %47 = vector.load %arg4[%c0_29, %c0_30] : memref<8x128xf32, #tpu.memory_space<vmem>>, vector<8x128xf32>
      %cst_31 = arith.constant dense<0.000000e+00> : vector<16x128xf32>
      %48 = tpu.matmul %39, %47, %cst_31 {dimension_numbers = #tpu.dot_dimension_numbers<[1], [0], [0], [1], [0, 0, 1, 1], [], []>} : vector<16x8xf32>, vector<8x128xf32>, vector<16x128xf32> -> vector<16x128xf32>
      %c0_32 = arith.constant 0 : index
      %c0_33 = arith.constant 0 : index
      %49 = vector.load %arg7[%c0_32, %c0_33] : memref<1x128xf32, #tpu.memory_space<vmem>>, vector<1x128xf32>
      %50 = vector.broadcast %49 : vector<1x128xf32> to vector<16x128xf32>
      %51 = arith.addf %48, %50 : vector<16x128xf32>
      %c0_34 = arith.constant 0 : index
      %c0_35 = arith.constant 0 : index
      %52 = vector.load %arg11[%c0_34, %c0_35] : memref<16x128xf32, #tpu.memory_space<vmem>>, vector<16x128xf32>
      tpu.vector_store %arg11[%c0_34, %c0_35], %51 {strides = array<i32>} : memref<16x128xf32, #tpu.memory_space<vmem>>, vector<16x128xf32>,
    } else {
    }
    %c0 = arith.constant 0 : index
    %c0_1 = arith.constant 0 : index
    %3 = vector.load %arg1[%c0, %c0_1] : memref<4x256xi32, #tpu.memory_space<vmem>>, vector<4x256xi32>
    %4 = vector.extract_strided_slice %3 {offsets = [0, 0], sizes = [1, 256], strides = [1, 1]} : vector<4x256xi32> to vector<1x256xi32>
    %5 = vector.extract_strided_slice %3 {offsets = [1, 0], sizes = [1, 256], strides = [1, 1]} : vector<4x256xi32> to vector<1x256xi32>
    %6 = vector.extract_strided_slice %3 {offsets = [2, 0], sizes = [1, 256], strides = [1, 1]} : vector<4x256xi32> to vector<1x256xi32>
    %7 = vector.extract_strided_slice %3 {offsets = [3, 0], sizes = [1, 256], strides = [1, 1]} : vector<4x256xi32> to vector<1x256xi32>
    %8 = tpu.iota {dimensions = array<i32: 0>} : vector<16x256xi32>
    %9 = tpu.iota {dimensions = array<i32: 0>} : vector<24x256xi32>
    %10 = vector.broadcast %4 : vector<1x256xi32> to vector<16x256xi32>
    %11 = arith.cmpi eq, %8, %10 : vector<16x256xi32>
    %12 = arith.extui %11 : vector<16x256xi1> to vector<16x256xi32>
    %13 = arith.sitofp %12 : vector<16x256xi32> to vector<16x256xf32>
    %14 = vector.broadcast %5 : vector<1x256xi32> to vector<16x256xi32>
    %15 = arith.cmpi eq, %8, %14 : vector<16x256xi32>
    %16 = arith.extui %15 : vector<16x256xi1> to vector<16x256xi32>
    %17 = arith.sitofp %16 : vector<16x256xi32> to vector<16x256xf32>
    %18 = vector.broadcast %6 : vector<1x256xi32> to vector<24x256xi32>
    %19 = arith.cmpi eq, %9, %18 : vector<24x256xi32>
    %20 = arith.extui %19 : vector<24x256xi1> to vector<24x256xi32>
    %21 = arith.sitofp %20 : vector<24x256xi32> to vector<24x256xf32>
    %22 = vector.broadcast %7 : vector<1x256xi32> to vector<16x256xi32>
    %23 = arith.cmpi eq, %8, %22 : vector<16x256xi32>
    %24 = arith.extui %23 : vector<16x256xi1> to vector<16x256xi32>
    %25 = arith.sitofp %24 : vector<16x256xi32> to vector<16x256xf32>
    %c0_2 = arith.constant 0 : index
    %c0_3 = arith.constant 0 : index
    %26 = vector.load %arg9[%c0_2, %c0_3] : memref<16x128xf32, #tpu.memory_space<vmem>>, vector<16x128xf32>
    %cst = arith.constant dense<0.000000e+00> : vector<256x128xf32>
    %27 = tpu.matmul %13, %26, %cst {dimension_numbers = #tpu.dot_dimension_numbers<[0], [0], [1], [1], [0, 1, 1, 1], [], []>} : vector<16x256xf32>, vector<16x128xf32>, vector<256x128xf32> -> vector<256x128xf32>
    %c0_4 = arith.constant 0 : index
    %c0_5 = arith.constant 0 : index
    %28 = vector.load %arg10[%c0_4, %c0_5] : memref<24x128xf32, #tpu.memory_space<vmem>>, vector<24x128xf32>
    %cst_6 = arith.constant dense<0.000000e+00> : vector<256x128xf32>
    %29 = tpu.matmul %21, %28, %cst_6 {dimension_numbers = #tpu.dot_dimension_numbers<[0], [0], [1], [1], [0, 1, 1, 1], [], []>} : vector<24x256xf32>, vector<24x128xf32>, vector<256x128xf32> -> vector<256x128xf32>
    %c0_7 = arith.constant 0 : index
    %c0_8 = arith.constant 0 : index
    %30 = vector.load %arg11[%c0_7, %c0_8] : memref<16x128xf32, #tpu.memory_space<vmem>>, vector<16x128xf32>
    %cst_9 = arith.constant dense<0.000000e+00> : vector<16x128xf32>
    %31 = tpu.matmul %17, %27, %cst_9 {dimension_numbers = #tpu.dot_dimension_numbers<[1], [0], [0], [1], [0, 0, 1, 1], [], []>} : vector<16x256xf32>, vector<256x128xf32>, vector<16x128xf32> -> vector<16x128xf32>
    %cst_10 = arith.constant dense<0.000000e+00> : vector<16x128xf32>
    %32 = tpu.matmul %25, %29, %cst_10 {dimension_numbers = #tpu.dot_dimension_numbers<[1], [0], [0], [1], [0, 0, 1, 1], [], []>} : vector<16x256xf32>, vector<256x128xf32>, vector<16x128xf32> -> vector<16x128xf32>
    %33 = arith.addf %31, %32 : vector<16x128xf32>
    %34 = arith.addf %30, %33 : vector<16x128xf32>
    %c0_11 = arith.constant 0 : index
    %c0_12 = arith.constant 0 : index
    %35 = vector.load %arg11[%c0_11, %c0_12] : memref<16x128xf32, #tpu.memory_space<vmem>>, vector<16x128xf32>
    tpu.vector_store %arg11[%c0_11, %c0_12], %34 {strides = array<i32>} : memref<16x128xf32, #tpu.memory_space<vmem>>, vector<16x128xf32>,
    %c0_i32_13 = arith.constant 0 : i32
    %36 = arith.cmpi eq, %arg0, %c0_i32_13 : i32
    %37 = arith.extui %36 : i1 to i32
    %c0_i32_14 = arith.constant 0 : i32
    %38 = arith.cmpi ne, %37, %c0_i32_14 : i32
    scf.if %38 {
      %c0_15 = arith.constant 0 : index
      %c0_16 = arith.constant 0 : index
      %39 = vector.load %arg11[%c0_15, %c0_16] : memref<16x128xf32, #tpu.memory_space<vmem>>, vector<16x128xf32>
      %40 = arith.mulf %39, %39 : vector<16x128xf32>
      %cst_17 = arith.constant dense<0.000000e+00> : vector<16xf32>
      %41 = vector.multi_reduction <add>, %40, %cst_17 [1] : vector<16x128xf32> to vector<16xf32>
      %42 = vector.shape_cast %41 : vector<16xf32> to vector<16x1xf32>
      %cst_18 = arith.constant 1.000000e-24 : f32
      %43 = vector.broadcast %cst_18 : f32 to vector<16x1xf32>
      %44 = arith.maximumf %42, %43 : vector<16x1xf32>
      %45 = math.rsqrt %44 : vector<16x1xf32>
      %46 = vector.broadcast %45 : vector<16x1xf32> to vector<16x128xf32>
      %47 = arith.mulf %39, %46 : vector<16x128xf32>
      %cst_19 = arith.constant 0.000000e+00 : f32
      %48 = vector.broadcast %cst_19 : f32 to vector<16x128xf32>
      %49 = arith.cmpf oge, %47, %48 : vector<16x128xf32>
      %cst_20 = arith.constant 0.00999999977 : f32
      %50 = vector.broadcast %cst_20 : f32 to vector<16x128xf32>
      %51 = arith.mulf %50, %47 : vector<16x128xf32>
      %52 = arith.select %49, %47, %51 : vector<16x128xi1>, vector<16x128xf32>
      %c0_21 = arith.constant 0 : index
      %c0_22 = arith.constant 0 : index
      %53 = vector.load %arg8[%c0_21, %c0_22] : memref<16x128xf32, #tpu.memory_space<vmem>>, vector<16x128xf32>
      tpu.vector_store %arg8[%c0_21, %c0_22], %52 {strides = array<i32>} : memref<16x128xf32, #tpu.memory_space<vmem>>, vector<16x128xf32>,
    } else {
    }
    return
  }
  func.func @transform_0(%arg0: i32) -> (i32, i32) {
    %c0_i32 = arith.constant 0 : i32
    %c0_i32_0 = arith.constant 0 : i32
    return %c0_i32, %arg0 : i32, i32
  }
  func.func @transform_1(%arg0: i32) -> (i32, i32) {
    %c0_i32 = arith.constant 0 : i32
    %c0_i32_0 = arith.constant 0 : i32
    %c0_i32_1 = arith.constant 0 : i32
    return %c0_i32, %c0_i32_0 : i32, i32
  }
  func.func @transform_2(%arg0: i32) -> (i32, i32) {
    %c0_i32 = arith.constant 0 : i32
    %c0_i32_0 = arith.constant 0 : i32
    %c0_i32_1 = arith.constant 0 : i32
    return %c0_i32, %c0_i32_0 : i32, i32
  }
  func.func @transform_3(%arg0: i32) -> (i32, i32) {
    %c0_i32 = arith.constant 0 : i32
    %c0_i32_0 = arith.constant 0 : i32
    %c0_i32_1 = arith.constant 0 : i32
    return %c0_i32, %c0_i32_0 : i32, i32
  }
  func.func @transform_4(%arg0: i32) -> (i32, i32) {
    %c0_i32 = arith.constant 0 : i32
    %c0_i32_0 = arith.constant 0 : i32
    %c0_i32_1 = arith.constant 0 : i32
    return %c0_i32, %c0_i32_0 : i32, i32
  }
  func.func @transform_5(%arg0: i32) -> (i32, i32) {
    %c0_i32 = arith.constant 0 : i32
    %c0_i32_0 = arith.constant 0 : i32
    %c0_i32_1 = arith.constant 0 : i32
    return %c0_i32, %c0_i32_0 : i32, i32
  }
  func.func @transform_6(%arg0: i32) -> (i32, i32) {
    %c0_i32 = arith.constant 0 : i32
    %c0_i32_0 = arith.constant 0 : i32
    %c0_i32_1 = arith.constant 0 : i32
    return %c0_i32, %c0_i32_0 : i32, i32
  }
  func.func @transform_7(%arg0: i32) -> (i32, i32) {
    %c0_i32 = arith.constant 0 : i32
    %c0_i32_0 = arith.constant 0 : i32
    %c0_i32_1 = arith.constant 0 : i32
    return %c0_i32, %c0_i32_0 : i32, i32
  }
}

</mosaic_0001>

<llo_original>
// kernel: tpu_custom_call.1
$region0: #{tpu_custom_call.1}
  #allocation0 [shape = 'u32[]', space=smem, size = 0x4, offset = 0x4, fixed_abs, tag = 'smem constant byte address 0x4 - core index']
  #allocation1 [shape = 'u32[144,128]{1,0:T(1,128)}', space=vmem, size = 0x12000, scoped, tag = 'internal scratch']
  #allocation2 [shape = 'f32[16,128]{1,0:T(8,128)}', space=vmem, size = 0x2000, scoped, tag = 'scratch operand']
  #allocation3 [shape = 'f32[24,128]{1,0:T(8,128)}', space=vmem, size = 0x3000, scoped, tag = 'scratch operand']
  #allocation4 [shape = 'f32[16,128]{1,0:T(8,128)}', space=vmem, size = 0x2000, scoped, tag = 'scratch operand']
  %s0 = inlined_call_operand.vmem [shape: s32[4,256], index: 0, kind: input, shape index: {}]
  %s1 = inlined_call_operand.vmem [shape: f32[16,8], index: 1, kind: input, shape index: {}]
  %s2 = inlined_call_operand.vmem [shape: f32[24,6], index: 2, kind: input, shape index: {}]
  %s3 = inlined_call_operand.vmem [shape: f32[8,128], index: 3, kind: input, shape index: {}]
  %s4 = inlined_call_operand.vmem [shape: f32[8,128], index: 4, kind: input, shape index: {}]
  %s5 = inlined_call_operand.vmem [shape: f32[6,128], index: 5, kind: input, shape index: {}]
  %s6 = inlined_call_operand.vmem [shape: f32[1,128], index: 6, kind: input, shape index: {}]
  %s7 = inlined_call_operand.hbm [shape: f32[16,128], index: 7, kind: output, shape index: {}]
  %s8 = sld [smem:[#allocation0]]
  $region46: #{tpu_custom_call.1} parent=0
    _
  %s10 = ssub.s32 1, %s8
  %s11 = scalar_select 0, %s10, %s8
  $region1: #{tpu_custom_call.1} parent=0
    #allocation5 [shape = 'u8[8192]{0}', space=vmem, size = 0x2000, scoped, tag = 'output window, operand 0, single buffered']
    #allocation6 [shape = 's32[1]{0}', space=sflag, size = 0x4, scoped, tag = 'scoped memory for tpu_custom_call.1']
    %12 = vsyncpa [#allocation6], 0
    // Predicated region
    $region2: #{tpu_custom_call.1} parent=1 // pred_check
      _
    $region3: #{tpu_custom_call.1} parent=1 // pred_check_branch
      %14 = sbr.rel (0) target = $region5
    $region4: #{tpu_custom_call.1} parent=1 // pred_region
      _
    $region5: #{tpu_custom_call.1} parent=1 // pred_fallthru
      _
    // Predicated region
    $region6: #{tpu_custom_call.1} parent=1 // pred_check
      _
    $region7: #{tpu_custom_call.1} parent=1 // pred_check_branch
      %16 = sbr.rel (0) target = $region9
    $region8: #{tpu_custom_call.1} parent=1 // pred_region
      _
    $region9: #{tpu_custom_call.1} parent=1 // pred_fallthru
      _
    // Predicated region
    $region10: #{tpu_custom_call.1} parent=1 // pred_check
      _
    $region11: #{tpu_custom_call.1} parent=1 // pred_check_branch
      %18 = sbr.rel (0) target = $region13
    $region12: #{tpu_custom_call.1} parent=1 // pred_region
      _
    $region13: #{tpu_custom_call.1} parent=1 // pred_fallthru
      _
    // Predicated region
    $region14: #{tpu_custom_call.1} parent=1 // pred_check
      _
    $region15: #{tpu_custom_call.1} parent=1 // pred_check_branch
      %20 = sbr.rel (0) target = $region17
    $region16: #{tpu_custom_call.1} parent=1 // pred_region
      _
    $region17: #{tpu_custom_call.1} parent=1 // pred_fallthru
      _
    // Predicated region
    $region18: #{tpu_custom_call.1} parent=1 // pred_check
      _
    $region19: #{tpu_custom_call.1} parent=1 // pred_check_branch
      %22 = sbr.rel (0) target = $region21
    $region20: #{tpu_custom_call.1} parent=1 // pred_region
      _
    $region21: #{tpu_custom_call.1} parent=1 // pred_fallthru
      _
    // Predicated region
    $region22: #{tpu_custom_call.1} parent=1 // pred_check
      _
    $region23: #{tpu_custom_call.1} parent=1 // pred_check_branch
      %24 = sbr.rel (0) target = $region25
    $region24: #{tpu_custom_call.1} parent=1 // pred_region
      _
    $region25: #{tpu_custom_call.1} parent=1 // pred_fallthru
      _
    // Predicated region
    $region26: #{tpu_custom_call.1} parent=1 // pred_check
      _
    $region27: #{tpu_custom_call.1} parent=1 // pred_check_branch
      %26 = sbr.rel (0) target = $region29
    $region28: #{tpu_custom_call.1} parent=1 // pred_region
      _
    $region29: #{tpu_custom_call.1} parent=1 // pred_fallthru
      _
    %p27 = scmp.eq.s32.totalorder 0, 0
    // Predicated region
    $region30: #{tpu_custom_call.1} parent=1 // pred_check
      %p28 = pneg %p27
    $region31: #{tpu_custom_call.1} parent=1 // pred_check_branch
      %30 = sbr.rel (%p28) target = $region33
    $region32: #{tpu_custom_call.1} parent=1 // pred_region
      %v31 = vld [vmem:[%s1] sm:$0xff]
      %v32 = vld [vmem:[%s1 + $0x8] sm:$0xff]
      %v33 = vld [vmem:[%s2] sm:$0xff]
      %v34 = vld [vmem:[%s2 + $0x8] sm:$0xff]
      %v35 = vld [vmem:[%s2 + $0x10] sm:$0xff]
      %v36 = vld [vmem:[%s4] sm:$0xff]
      %vm37 = vcmask 64512
      %v39 = vsel %vm37, %v31, 0
      %v42 = vsel %vm37, %v32, 0
      %44 = vmatprep.subr.mxu0 0.0
      %45 = vmatpush1.msra.mxu0 %v36
      %46 = vmatprep.subr.mxu0 0.0
      %47 = vmatpush1.msra.mxu0 0.0
      %48 = vmatprep.subr.mxu0 0.0
      %49 = vmatpush1.msra.mxu0 0.0
      %50 = vmatprep.subr.mxu0 0.0
      %51 = vmatpush1.msra.mxu0 0.0
      %52 = vmatprep.subr.mxu0 0.0
      %53 = vmatpush1.msra.mxu0 0.0
      %54 = vmatprep.subr.mxu0 0.0
      %55 = vmatpush1.msra.mxu0 0.0
      %56 = vmatprep.subr.mxu0 0.0
      %57 = vmatpush1.msra.mxu0 0.0
      %58 = vmatprep.subr.mxu0 0.0
      %59 = vmatpush1.msra.mxu0 0.0
      %60 = vmatprep.subr.mxu0 0.0
      %61 = vmatpush1.msra.mxu0 0.0
      %62 = vmatprep.subr.mxu0 0.0
      %63 = vmatpush1.msra.mxu0 0.0
      %64 = vmatprep.subr.mxu0 0.0
      %65 = vmatpush1.msra.mxu0 0.0
      %66 = vmatprep.subr.mxu0 0.0
      %67 = vmatpush1.msra.mxu0 0.0
      %68 = vmatprep.subr.mxu0 0.0
      %69 = vmatpush1.msra.mxu0 0.0
      %70 = vmatprep.subr.mxu0 0.0
      %71 = vmatpush1.msra.mxu0 0.0
      %72 = vmatprep.subr.mxu0 0.0
      %73 = vmatpush1.msra.mxu0 0.0
      %74 = vmatprep.subr.mxu0 0.0
      %75 = vmatpush1.msra.mxu0 0.0
      %76 = vmatprep.subr.mxu0 0.0
      %77 = vmatpush1.msra.mxu0 0.0
      %78 = vmatprep.subr.mxu0 0.0
      %79 = vmatpush1.msra.mxu0 0.0
      %80 = vmatprep.subr.mxu0 0.0
      %81 = vmatpush1.msra.mxu0 0.0
      %82 = vmatprep.subr.mxu0 0.0
      %83 = vmatpush1.msra.mxu0 0.0
      %84 = vmatprep.subr.mxu0 0.0
      %85 = vmatpush1.msra.mxu0 0.0
      %86 = vmatprep.subr.mxu0 0.0
      %87 = vmatpush1.msra.mxu0 0.0
      %88 = vmatprep.subr.mxu0 0.0
      %89 = vmatpush1.msra.mxu0 0.0
      %90 = vmatprep.subr.mxu0 0.0
      %91 = vmatpush1.msra.mxu0 0.0
      %92 = vmatprep.subr.mxu0 0.0
      %93 = vmatpush1.msra.mxu0 0.0
      %94 = vmatprep.subr.mxu0 0.0
      %95 = vmatpush1.msra.mxu0 0.0
      %96 = vmatprep.subr.mxu0 0.0
      %97 = vmatpush1.msra.mxu0 0.0
      %98 = vmatprep.subr.mxu0 0.0
      %99 = vmatpush1.msra.mxu0 0.0
      %100 = vmatprep.subr.mxu0 0.0
      %101 = vmatpush1.msra.mxu0 0.0
      %102 = vmatprep.subr.mxu0 0.0
      %103 = vmatpush1.msra.mxu0 0.0
      %104 = vmatprep.subr.mxu0 0.0
      %105 = vmatpush1.msra.mxu0 0.0
      %106 = vmatprep.subr.mxu0 0.0
      %107 = vmatpush1.msra.mxu0 0.0
      %108 = vmatprep.mubr.f32.mxu0 0.0
      %109 = vmatmul.mubr.f32.gmra.mrb[0].mxu0 %v39
      %v110 = vpop.f32.mrb[0].mxu0
      %v111 = vadd.f32 0.0, %v110
      %v112 = vpop.f32.mrb[0].mxu0
      %113 = vmatprep.mubr.f32.mxu0 0.0
      %114 = vmatmul.mubr.f32.gmra.mrb[0].mxu0 %v42
      %v115 = vpop.f32.mrb[0].mxu0
      %v116 = vadd.f32 0.0, %v115
      %v117 = vpop.f32.mrb[0].mxu0
      %118 = vdwg.mxu0
      %119 = vst [vmem:[#allocation2] sm:$0xff] %v111
      %120 = vst [vmem:[#allocation2 + $0x8] sm:$0xff] %v116
      %v121 = vld [vmem:[%s5] sm:$0x3f]
      %vm122 = vcmask 48128
      %v124 = vsel %vm122, %v33, 0
      %v127 = vsel %vm122, %v34, 0
      %v130 = vsel %vm122, %v35, 0
      %vm132 = vcmask 1045504
      %v134 = vsel %vm132, %v121, 0
      %136 = vmatprep.subr.mxu0 0.0
      %137 = vmatpush1.msra.mxu0 %v134
      %138 = vmatprep.subr.mxu0 0.0
      %139 = vmatpush1.msra.mxu0 0.0
      %140 = vmatprep.subr.mxu0 0.0
      %141 = vmatpush1.msra.mxu0 0.0
      %142 = vmatprep.subr.mxu0 0.0
      %143 = vmatpush1.msra.mxu0 0.0
      %144 = vmatprep.subr.mxu0 0.0
      %145 = vmatpush1.msra.mxu0 0.0
      %146 = vmatprep.subr.mxu0 0.0
      %147 = vmatpush1.msra.mxu0 0.0
      %148 = vmatprep.subr.mxu0 0.0
      %149 = vmatpush1.msra.mxu0 0.0
      %150 = vmatprep.subr.mxu0 0.0
      %151 = vmatpush1.msra.mxu0 0.0
      %152 = vmatprep.subr.mxu0 0.0
      %153 = vmatpush1.msra.mxu0 0.0
      %154 = vmatprep.subr.mxu0 0.0
      %155 = vmatpush1.msra.mxu0 0.0
      %156 = vmatprep.subr.mxu0 0.0
      %157 = vmatpush1.msra.mxu0 0.0
      %158 = vmatprep.subr.mxu0 0.0
      %159 = vmatpush1.msra.mxu0 0.0
      %160 = vmatprep.subr.mxu0 0.0
      %161 = vmatpush1.msra.mxu0 0.0
      %162 = vmatprep.subr.mxu0 0.0
      %163 = vmatpush1.msra.mxu0 0.0
      %164 = vmatprep.subr.mxu0 0.0
      %165 = vmatpush1.msra.mxu0 0.0
      %166 = vmatprep.subr.mxu0 0.0
      %167 = vmatpush1.msra.mxu0 0.0
      %168 = vmatprep.subr.mxu0 0.0
      %169 = vmatpush1.msra.mxu0 0.0
      %170 = vmatprep.subr.mxu0 0.0
      %171 = vmatpush1.msra.mxu0 0.0
      %172 = vmatprep.subr.mxu0 0.0
      %173 = vmatpush1.msra.mxu0 0.0
      %174 = vmatprep.subr.mxu0 0.0
      %175 = vmatpush1.msra.mxu0 0.0
      %176 = vmatprep.subr.mxu0 0.0
      %177 = vmatpush1.msra.mxu0 0.0
      %178 = vmatprep.subr.mxu0 0.0
      %179 = vmatpush1.msra.mxu0 0.0
      %180 = vmatprep.subr.mxu0 0.0
      %181 = vmatpush1.msra.mxu0 0.0
      %182 = vmatprep.subr.mxu0 0.0
      %183 = vmatpush1.msra.mxu0 0.0
      %184 = vmatprep.subr.mxu0 0.0
      %185 = vmatpush1.msra.mxu0 0.0
      %186 = vmatprep.subr.mxu0 0.0
      %187 = vmatpush1.msra.mxu0 0.0
      %188 = vmatprep.subr.mxu0 0.0
      %189 = vmatpush1.msra.mxu0 0.0
      %190 = vmatprep.subr.mxu0 0.0
      %191 = vmatpush1.msra.mxu0 0.0
      %192 = vmatprep.subr.mxu0 0.0
      %193 = vmatpush1.msra.mxu0 0.0
      %194 = vmatprep.subr.mxu0 0.0
      %195 = vmatpush1.msra.mxu0 0.0
      %196 = vmatprep.subr.mxu0 0.0
      %197 = vmatpush1.msra.mxu0 0.0
      %198 = vmatprep.subr.mxu0 0.0
      %199 = vmatpush1.msra.mxu0 0.0
      %200 = vmatprep.mubr.f32.mxu0 0.0
      %201 = vmatmul.mubr.f32.gmra.mrb[0].mxu0 %v124
      %v202 = vpop.f32.mrb[0].mxu0
      %v203 = vadd.f32 0.0, %v202
      %v204 = vpop.f32.mrb[0].mxu0
      %205 = vmatprep.mubr.f32.mxu0 0.0
      %206 = vmatmul.mubr.f32.gmra.mrb[0].mxu0 %v127
      %v207 = vpop.f32.mrb[0].mxu0
      %v208 = vadd.f32 0.0, %v207
      %v209 = vpop.f32.mrb[0].mxu0
      %210 = vmatprep.mubr.f32.mxu0 0.0
      %211 = vmatmul.mubr.f32.gmra.mrb[0].mxu0 %v130
      %v212 = vpop.f32.mrb[0].mxu0
      %v213 = vadd.f32 0.0, %v212
      %v214 = vpop.f32.mrb[0].mxu0
      %215 = vdwg.mxu0
      %216 = vst [vmem:[#allocation3] sm:$0xff] %v203
      %217 = vst [vmem:[#allocation3 + $0x8] sm:$0xff] %v208
      %218 = vst [vmem:[#allocation3 + $0x10] sm:$0xff] %v213
      %v219 = vld [vmem:[%s3] sm:$0xff]
      %v220 = vld [vmem:[%s6] sm:$0x1]
      %v222 = vlaneseq
      %v223 = vshrl.u32 %v222, 7
      %v224 = vsub.s32 0, %v223
      %v225 = vrot.slane %v220, %v224
      %227 = vmatprep.subr.mxu0 0.0
      %228 = vmatpush1.msra.mxu0 %v219
      %229 = vmatprep.subr.mxu0 0.0
      %230 = vmatpush1.msra.mxu0 0.0
      %231 = vmatprep.subr.mxu0 0.0
      %232 = vmatpush1.msra.mxu0 0.0
      %233 = vmatprep.subr.mxu0 0.0
      %234 = vmatpush1.msra.mxu0 0.0
      %235 = vmatprep.subr.mxu0 0.0
      %236 = vmatpush1.msra.mxu0 0.0
      %237 = vmatprep.subr.mxu0 0.0
      %238 = vmatpush1.msra.mxu0 0.0
      %239 = vmatprep.subr.mxu0 0.0
      %240 = vmatpush1.msra.mxu0 0.0
      %241 = vmatprep.subr.mxu0 0.0
      %242 = vmatpush1.msra.mxu0 0.0
      %243 = vmatprep.subr.mxu0 0.0
      %244 = vmatpush1.msra.mxu0 0.0
      %245 = vmatprep.subr.mxu0 0.0
      %246 = vmatpush1.msra.mxu0 0.0
      %247 = vmatprep.subr.mxu0 0.0
      %248 = vmatpush1.msra.mxu0 0.0
      %249 = vmatprep.subr.mxu0 0.0
      %250 = vmatpush1.msra.mxu0 0.0
      %251 = vmatprep.subr.mxu0 0.0
      %252 = vmatpush1.msra.mxu0 0.0
      %253 = vmatprep.subr.mxu0 0.0
      %254 = vmatpush1.msra.mxu0 0.0
      %255 = vmatprep.subr.mxu0 0.0
      %256 = vmatpush1.msra.mxu0 0.0
      %257 = vmatprep.subr.mxu0 0.0
      %258 = vmatpush1.msra.mxu0 0.0
      %259 = vmatprep.subr.mxu0 0.0
      %260 = vmatpush1.msra.mxu0 0.0
      %261 = vmatprep.subr.mxu0 0.0
      %262 = vmatpush1.msra.mxu0 0.0
      %263 = vmatprep.subr.mxu0 0.0
      %264 = vmatpush1.msra.mxu0 0.0
      %265 = vmatprep.subr.mxu0 0.0
      %266 = vmatpush1.msra.mxu0 0.0
      %267 = vmatprep.subr.mxu0 0.0
      %268 = vmatpush1.msra.mxu0 0.0
      %269 = vmatprep.subr.mxu0 0.0
      %270 = vmatpush1.msra.mxu0 0.0
      %271 = vmatprep.subr.mxu0 0.0
      %272 = vmatpush1.msra.mxu0 0.0
      %273 = vmatprep.subr.mxu0 0.0
      %274 = vmatpush1.msra.mxu0 0.0
      %275 = vmatprep.subr.mxu0 0.0
      %276 = vmatpush1.msra.mxu0 0.0
      %277 = vmatprep.subr.mxu0 0.0
      %278 = vmatpush1.msra.mxu0 0.0
      %279 = vmatprep.subr.mxu0 0.0
      %280 = vmatpush1.msra.mxu0 0.0
      %281 = vmatprep.subr.mxu0 0.0
      %282 = vmatpush1.msra.mxu0 0.0
      %283 = vmatprep.subr.mxu0 0.0
      %284 = vmatpush1.msra.mxu0 0.0
      %285 = vmatprep.subr.mxu0 0.0
      %286 = vmatpush1.msra.mxu0 0.0
      %287 = vmatprep.subr.mxu0 0.0
      %288 = vmatpush1.msra.mxu0 0.0
      %289 = vmatprep.subr.mxu0 0.0
      %290 = vmatpush1.msra.mxu0 0.0
      %291 = vmatprep.mubr.f32.mxu0 0.0
      %292 = vmatmul.mubr.f32.gmra.mrb[0].mxu0 %v39
      %v293 = vpop.f32.mrb[0].mxu0
      %v294 = vadd.f32 %v225, %v293
      %v295 = vpop.f32.mrb[0].mxu0
      %296 = vmatprep.mubr.f32.mxu0 0.0
      %297 = vmatmul.mubr.f32.gmra.mrb[0].mxu0 %v42
      %v298 = vpop.f32.mrb[0].mxu0
      %v299 = vadd.f32 %v225, %v298
      %v300 = vpop.f32.mrb[0].mxu0
      %301 = vdwg.mxu0
      %302 = vst [vmem:[#allocation4] sm:$0xff] %v294
      %303 = vst [vmem:[#allocation4 + $0x8] sm:$0xff] %v299
    $region33: #{tpu_custom_call.1} parent=1 // pred_fallthru
      _
    %v304 = vld [vmem:[%s0] sm:$0xff]
    %v305 = vlaneseq
    %v306 = vshrl.u32 %v305, 7
    %v307 = vadd.s32 %v306, 8
    %v308 = vadd.s32 %v306, 16
    %v309 = vlaneseq
    %v310 = vshrl.u32 %v309, 7
    %v311 = vsub.s32 0, %v310
    %v312 = vrot.slane %v304, %v311
    %v313 = vlaneseq
    %v314 = vshrl.u32 %v313, 7
    %v315 = vsub.s32 4, %v314
    %v316 = vrot.slane %v304, %v315
    %v317 = vlaneseq
    %v318 = vshrl.u32 %v317, 7
    %v319 = vsub.s32 0, %v318
    %v320 = vrot.slane %v312, %v319
    %v321 = vlaneseq
    %v322 = vshrl.u32 %v321, 7
    %v323 = vsub.s32 0, %v322
    %v324 = vrot.slane %v316, %v323
    %vm325 = vcmp.eq.s32.totalorder %v306, %v320
    %vm326 = vcmp.eq.s32.totalorder %v306, %v324
    %vm327 = vcmp.eq.s32.totalorder %v307, %v320
    %vm328 = vcmp.eq.s32.totalorder %v307, %v324
    %v329 = vsel %vm325, 1, 0
    %v330 = vsel %vm326, 1, 0
    %v331 = vsel %vm327, 1, 0
    %v332 = vsel %vm328, 1, 0
    %v333 = vcvt.s32.f32 %v329
    %v334 = vcvt.s32.f32 %v330
    %v335 = vcvt.s32.f32 %v331
    %v336 = vcvt.s32.f32 %v332
    %v337 = vlaneseq
    %v338 = vshrl.u32 %v337, 7
    %v339 = vsub.s32 1, %v338
    %v340 = vrot.slane %v304, %v339
    %v341 = vlaneseq
    %v342 = vshrl.u32 %v341, 7
    %v343 = vsub.s32 5, %v342
    %v344 = vrot.slane %v304, %v343
    %v345 = vlaneseq
    %v346 = vshrl.u32 %v345, 7
    %v347 = vsub.s32 1, %v346
    %v348 = vrot.slane %v340, %v347
    %v349 = vlaneseq
    %v350 = vshrl.u32 %v349, 7
    %v351 = vsub.s32 1, %v350
    %v352 = vrot.slane %v344, %v351
    %vm353 = vcmp.eq.s32.totalorder %v306, %v348
    %vm354 = vcmp.eq.s32.totalorder %v306, %v352
    %vm355 = vcmp.eq.s32.totalorder %v307, %v348
    %vm356 = vcmp.eq.s32.totalorder %v307, %v352
    %v357 = vsel %vm353, 1, 0
    %v358 = vsel %vm354, 1, 0
    %v359 = vsel %vm355, 1, 0
    %v360 = vsel %vm356, 1, 0
    %v361 = vcvt.s32.f32 %v357
    %v362 = vcvt.s32.f32 %v358
    %v363 = vcvt.s32.f32 %v359
    %v364 = vcvt.s32.f32 %v360
    %v365 = vlaneseq
    %v366 = vshrl.u32 %v365, 7
    %v367 = vsub.s32 2, %v366
    %v368 = vrot.slane %v304, %v367
    %v369 = vlaneseq
    %v370 = vshrl.u32 %v369, 7
    %v371 = vsub.s32 6, %v370
    %v372 = vrot.slane %v304, %v371
    %v373 = vlaneseq
    %v374 = vshrl.u32 %v373, 7
    %v375 = vsub.s32 2, %v374
    %v376 = vrot.slane %v368, %v375
    %v377 = vlaneseq
    %v378 = vshrl.u32 %v377, 7
    %v379 = vsub.s32 2, %v378
    %v380 = vrot.slane %v372, %v379
    %vm381 = vcmp.eq.s32.totalorder %v306, %v376
    %vm382 = vcmp.eq.s32.totalorder %v306, %v380
    %vm383 = vcmp.eq.s32.totalorder %v307, %v376
    %vm384 = vcmp.eq.s32.totalorder %v307, %v380
    %vm385 = vcmp.eq.s32.totalorder %v308, %v376
    %vm386 = vcmp.eq.s32.totalorder %v308, %v380
    %v387 = vsel %vm381, 1, 0
    %v388 = vsel %vm382, 1, 0
    %v389 = vsel %vm383, 1, 0
    %v390 = vsel %vm384, 1, 0
    %v391 = vsel %vm385, 1, 0
    %v392 = vsel %vm386, 1, 0
    %v393 = vcvt.s32.f32 %v387
    %v394 = vcvt.s32.f32 %v388
    %v395 = vcvt.s32.f32 %v389
    %v396 = vcvt.s32.f32 %v390
    %v397 = vcvt.s32.f32 %v391
    %v398 = vcvt.s32.f32 %v392
    %v399 = vlaneseq
    %v400 = vshrl.u32 %v399, 7
    %v401 = vsub.s32 3, %v400
    %v402 = vrot.slane %v304, %v401
    %v403 = vlaneseq
    %v404 = vshrl.u32 %v403, 7
    %v405 = vsub.s32 7, %v404
    %v406 = vrot.slane %v304, %v405
    %v407 = vlaneseq
    %v408 = vshrl.u32 %v407, 7
    %v409 = vsub.s32 3, %v408
    %v410 = vrot.slane %v402, %v409
    %v411 = vlaneseq
    %v412 = vshrl.u32 %v411, 7
    %v413 = vsub.s32 3, %v412
    %v414 = vrot.slane %v406, %v413
    %vm415 = vcmp.eq.s32.totalorder %v306, %v410
    %vm416 = vcmp.eq.s32.totalorder %v306, %v414
    %vm417 = vcmp.eq.s32.totalorder %v307, %v410
    %vm418 = vcmp.eq.s32.totalorder %v307, %v414
    %v419 = vsel %vm415, 1, 0
    %v420 = vsel %vm416, 1, 0
    %v421 = vsel %vm417, 1, 0
    %v422 = vsel %vm418, 1, 0
    %v423 = vcvt.s32.f32 %v419
    %v424 = vcvt.s32.f32 %v420
    %v425 = vcvt.s32.f32 %v421
    %v426 = vcvt.s32.f32 %v422
    %v427 = vld [vmem:[#allocation2] sm:$0xff]
    %v428 = vld [vmem:[#allocation2 + $0x8] sm:$0xff]
    %429 = vxpose.xlu0.b32.start [1/16] %v333, 128
    %430 = vxpose.xlu0.b32.cont [2/16] %v335, 128
    %431 = vxpose.xlu0.b32.cont [3/16] 0.0, 128
    %432 = vxpose.xlu0.b32.cont [4/16] 0.0, 128
    %433 = vxpose.xlu0.b32.cont [5/16] 0.0, 128
    %434 = vxpose.xlu0.b32.cont [6/16] 0.0, 128
    %435 = vxpose.xlu0.b32.cont [7/16] 0.0, 128
    %436 = vxpose.xlu0.b32.cont [8/16] 0.0, 128
    %437 = vxpose.xlu0.b32.cont [9/16] 0.0, 128
    %438 = vxpose.xlu0.b32.cont [10/16] 0.0, 128
    %439 = vxpose.xlu0.b32.cont [11/16] 0.0, 128
    %440 = vxpose.xlu0.b32.cont [12/16] 0.0, 128
    %441 = vxpose.xlu0.b32.cont [13/16] 0.0, 128
    %442 = vxpose.xlu0.b32.cont [14/16] 0.0, 128
    %443 = vxpose.xlu0.b32.cont [15/16] 0.0, 128
    %444 = vxpose.xlu0.b32.end [16/16] 0.0, 128
    %v445 = vpop.trf.xlu0
    %v446 = vpop.trf.xlu0
    %v447 = vpop.trf.xlu0
    %v448 = vpop.trf.xlu0
    %v449 = vpop.trf.xlu0
    %v450 = vpop.trf.xlu0
    %v451 = vpop.trf.xlu0
    %v452 = vpop.trf.xlu0
    %v453 = vpop.trf.xlu0
    %v454 = vpop.trf.xlu0
    %v455 = vpop.trf.xlu0
    %v456 = vpop.trf.xlu0
    %v457 = vpop.trf.xlu0
    %v458 = vpop.trf.xlu0
    %v459 = vpop.trf.xlu0
    %v460 = vpop.trf.xlu0
    %461 = vxpose.xlu0.b32.start [1/16] %v334, 128
    %462 = vxpose.xlu0.b32.cont [2/16] %v336, 128
    %463 = vxpose.xlu0.b32.cont [3/16] 0.0, 128
    %464 = vxpose.xlu0.b32.cont [4/16] 0.0, 128
    %465 = vxpose.xlu0.b32.cont [5/16] 0.0, 128
    %466 = vxpose.xlu0.b32.cont [6/16] 0.0, 128
    %467 = vxpose.xlu0.b32.cont [7/16] 0.0, 128
    %468 = vxpose.xlu0.b32.cont [8/16] 0.0, 128
    %469 = vxpose.xlu0.b32.cont [9/16] 0.0, 128
    %470 = vxpose.xlu0.b32.cont [10/16] 0.0, 128
    %471 = vxpose.xlu0.b32.cont [11/16] 0.0, 128
    %472 = vxpose.xlu0.b32.cont [12/16] 0.0, 128
    %473 = vxpose.xlu0.b32.cont [13/16] 0.0, 128
    %474 = vxpose.xlu0.b32.cont [14/16] 0.0, 128
    %475 = vxpose.xlu0.b32.cont [15/16] 0.0, 128
    %476 = vxpose.xlu0.b32.end [16/16] 0.0, 128
    %v477 = vpop.trf.xlu0
    %v478 = vpop.trf.xlu0
    %v479 = vpop.trf.xlu0
    %v480 = vpop.trf.xlu0
    %v481 = vpop.trf.xlu0
    %v482 = vpop.trf.xlu0
    %v483 = vpop.trf.xlu0
    %v484 = vpop.trf.xlu0
    %v485 = vpop.trf.xlu0
    %v486 = vpop.trf.xlu0
    %v487 = vpop.trf.xlu0
    %v488 = vpop.trf.xlu0
    %v489 = vpop.trf.xlu0
    %v490 = vpop.trf.xlu0
    %v491 = vpop.trf.xlu0
    %v492 = vpop.trf.xlu0
    %vm493 = vcmask 130048
    %v495 = vsel %vm493, %v445, 0
    %v498 = vsel %vm493, %v446, 0
    %v501 = vsel %vm493, %v447, 0
    %v504 = vsel %vm493, %v448, 0
    %v507 = vsel %vm493, %v449, 0
    %v510 = vsel %vm493, %v450, 0
    %v513 = vsel %vm493, %v451, 0
    %v516 = vsel %vm493, %v452, 0
    %v519 = vsel %vm493, %v453, 0
    %v522 = vsel %vm493, %v454, 0
    %v525 = vsel %vm493, %v455, 0
    %v528 = vsel %vm493, %v456, 0
    %v531 = vsel %vm493, %v457, 0
    %v534 = vsel %vm493, %v458, 0
    %v537 = vsel %vm493, %v459, 0
    %v540 = vsel %vm493, %v460, 0
    %v543 = vsel %vm493, %v477, 0
    %v546 = vsel %vm493, %v478, 0
    %v549 = vsel %vm493, %v479, 0
    %v552 = vsel %vm493, %v480, 0
    %v555 = vsel %vm493, %v481, 0
    %v558 = vsel %vm493, %v482, 0
    %v561 = vsel %vm493, %v483, 0
    %v564 = vsel %vm493, %v484, 0
    %v567 = vsel %vm493, %v485, 0
    %v570 = vsel %vm493, %v486, 0
    %v573 = vsel %vm493, %v487, 0
    %v576 = vsel %vm493, %v488, 0
    %v579 = vsel %vm493, %v489, 0
    %v582 = vsel %vm493, %v490, 0
    %v585 = vsel %vm493, %v491, 0
    %v588 = vsel %vm493, %v492, 0
    %590 = vmatprep.subr.mxu0 0.0
    %591 = vmatpush1.msra.mxu0 %v427
    %592 = vmatprep.subr.mxu0 0.0
    %593 = vmatpush1.msra.mxu0 %v428
    %594 = vmatprep.subr.mxu0 0.0
    %595 = vmatpush1.msra.mxu0 0.0
    %596 = vmatprep.subr.mxu0 0.0
    %597 = vmatpush1.msra.mxu0 0.0
    %598 = vmatprep.subr.mxu0 0.0
    %599 = vmatpush1.msra.mxu0 0.0
    %600 = vmatprep.subr.mxu0 0.0
    %601 = vmatpush1.msra.mxu0 0.0
    %602 = vmatprep.subr.mxu0 0.0
    %603 = vmatpush1.msra.mxu0 0.0
    %604 = vmatprep.subr.mxu0 0.0
    %605 = vmatpush1.msra.mxu0 0.0
    %606 = vmatprep.subr.mxu0 0.0
    %607 = vmatpush1.msra.mxu0 0.0
    %608 = vmatprep.subr.mxu0 0.0
    %609 = vmatpush1.msra.mxu0 0.0
    %610 = vmatprep.subr.mxu0 0.0
    %611 = vmatpush1.msra.mxu0 0.0
    %612 = vmatprep.subr.mxu0 0.0
    %613 = vmatpush1.msra.mxu0 0.0
    %614 = vmatprep.subr.mxu0 0.0
    %615 = vmatpush1.msra.mxu0 0.0
    %616 = vmatprep.subr.mxu0 0.0
    %617 = vmatpush1.msra.mxu0 0.0
    %618 = vmatprep.subr.mxu0 0.0
    %619 = vmatpush1.msra.mxu0 0.0
    %620 = vmatprep.subr.mxu0 0.0
    %621 = vmatpush1.msra.mxu0 0.0
    %622 = vmatprep.subr.mxu0 0.0
    %623 = vmatpush1.msra.mxu0 0.0
    %624 = vmatprep.subr.mxu0 0.0
    %625 = vmatpush1.msra.mxu0 0.0
    %626 = vmatprep.subr.mxu0 0.0
    %627 = vmatpush1.msra.mxu0 0.0
    %628 = vmatprep.subr.mxu0 0.0
    %629 = vmatpush1.msra.mxu0 0.0
    %630 = vmatprep.subr.mxu0 0.0
    %631 = vmatpush1.msra.mxu0 0.0
    %632 = vmatprep.subr.mxu0 0.0
    %633 = vmatpush1.msra.mxu0 0.0
    %634 = vmatprep.subr.mxu0 0.0
    %635 = vmatpush1.msra.mxu0 0.0
    %636 = vmatprep.subr.mxu0 0.0
    %637 = vmatpush1.msra.mxu0 0.0
    %638 = vmatprep.subr.mxu0 0.0
    %639 = vmatpush1.msra.mxu0 0.0
    %640 = vmatprep.subr.mxu0 0.0
    %641 = vmatpush1.msra.mxu0 0.0
    %642 = vmatprep.subr.mxu0 0.0
    %643 = vmatpush1.msra.mxu0 0.0
    %644 = vmatprep.subr.mxu0 0.0
    %645 = vmatpush1.msra.mxu0 0.0
    %646 = vmatprep.subr.mxu0 0.0
    %647 = vmatpush1.msra.mxu0 0.0
    %648 = vmatprep.subr.mxu0 0.0
    %649 = vmatpush1.msra.mxu0 0.0
    %650 = vmatprep.subr.mxu0 0.0
    %651 = vmatpush1.msra.mxu0 0.0
    %652 = vmatprep.subr.mxu0 0.0
    %653 = vmatpush1.msra.mxu0 0.0
    %654 = vmatprep.mubr.f32.mxu0 0.0
    %655 = vmatmul.mubr.f32.gmra.mrb[0].mxu0 %v495
    %v656 = vpop.f32.mrb[0].mxu0
    %v657 = vadd.f32 0.0, %v656
    %v658 = vpop.f32.mrb[0].mxu0
    %659 = vmatprep.mubr.f32.mxu0 0.0
    %660 = vmatmul.mubr.f32.gmra.mrb[0].mxu0 %v498
    %v661 = vpop.f32.mrb[0].mxu0
    %v662 = vadd.f32 0.0, %v661
    %v663 = vpop.f32.mrb[0].mxu0
    %664 = vmatprep.mubr.f32.mxu0 0.0
    %665 = vmatmul.mubr.f32.gmra.mrb[0].mxu0 %v501
    %v666 = vpop.f32.mrb[0].mxu0
    %v667 = vadd.f32 0.0, %v666
    %v668 = vpop.f32.mrb[0].mxu0
    %669 = vmatprep.mubr.f32.mxu0 0.0
    %670 = vmatmul.mubr.f32.gmra.mrb[0].mxu0 %v504
    %v671 = vpop.f32.mrb[0].mxu0
    %v672 = vadd.f32 0.0, %v671
    %v673 = vpop.f32.mrb[0].mxu0
    %674 = vmatprep.mubr.f32.mxu0 0.0
    %675 = vmatmul.mubr.f32.gmra.mrb[0].mxu0 %v507
    %v676 = vpop.f32.mrb[0].mxu0
    %v677 = vadd.f32 0.0, %v676
    %v678 = vpop.f32.mrb[0].mxu0
    %679 = vmatprep.mubr.f32.mxu0 0.0
    %680 = vmatmul.mubr.f32.gmra.mrb[0].mxu0 %v510
    %v681 = vpop.f32.mrb[0].mxu0
    %v682 = vadd.f32 0.0, %v681
    %v683 = vpop.f32.mrb[0].mxu0
    %684 = vmatprep.mubr.f32.mxu0 0.0
    %685 = vmatmul.mubr.f32.gmra.mrb[0].mxu0 %v513
    %v686 = vpop.f32.mrb[0].mxu0
    %v687 = vadd.f32 0.0, %v686
    %v688 = vpop.f32.mrb[0].mxu0
    %689 = vmatprep.mubr.f32.mxu0 0.0
    %690 = vmatmul.mubr.f32.gmra.mrb[0].mxu0 %v516
    %v691 = vpop.f32.mrb[0].mxu0
    %v692 = vadd.f32 0.0, %v691
    %v693 = vpop.f32.mrb[0].mxu0
    %694 = vmatprep.mubr.f32.mxu0 0.0
    %695 = vmatmul.mubr.f32.gmra.mrb[0].mxu0 %v519
    %v696 = vpop.f32.mrb[0].mxu0
    %v697 = vadd.f32 0.0, %v696
    %v698 = vpop.f32.mrb[0].mxu0
    %699 = vmatprep.mubr.f32.mxu0 0.0
    %700 = vmatmul.mubr.f32.gmra.mrb[0].mxu0 %v522
    %v701 = vpop.f32.mrb[0].mxu0
    %v702 = vadd.f32 0.0, %v701
    %v703 = vpop.f32.mrb[0].mxu0
    %704 = vmatprep.mubr.f32.mxu0 0.0
    %705 = vmatmul.mubr.f32.gmra.mrb[0].mxu0 %v525
    %v706 = vpop.f32.mrb[0].mxu0
    %v707 = vadd.f32 0.0, %v706
    %v708 = vpop.f32.mrb[0].mxu0
    %709 = vmatprep.mubr.f32.mxu0 0.0
    %710 = vmatmul.mubr.f32.gmra.mrb[0].mxu0 %v528
    %v711 = vpop.f32.mrb[0].mxu0
    %v712 = vadd.f32 0.0, %v711
    %v713 = vpop.f32.mrb[0].mxu0
    %714 = vmatprep.mubr.f32.mxu0 0.0
    %715 = vmatmul.mubr.f32.gmra.mrb[0].mxu0 %v531
    %v716 = vpop.f32.mrb[0].mxu0
    %v717 = vadd.f32 0.0, %v716
    %v718 = vpop.f32.mrb[0].mxu0
    %719 = vmatprep.mubr.f32.mxu0 0.0
    %720 = vmatmul.mubr.f32.gmra.mrb[0].mxu0 %v534
    %v721 = vpop.f32.mrb[0].mxu0
    %v722 = vadd.f32 0.0, %v721
    %v723 = vpop.f32.mrb[0].mxu0
    %724 = vmatprep.mubr.f32.mxu0 0.0
    %725 = vmatmul.mubr.f32.gmra.mrb[0].mxu0 %v537
    %v726 = vpop.f32.mrb[0].mxu0
    %v727 = vadd.f32 0.0, %v726
    %v728 = vpop.f32.mrb[0].mxu0
    %729 = vmatprep.mubr.f32.mxu0 0.0
    %730 = vmatmul.mubr.f32.gmra.mrb[0].mxu0 %v540
    %v731 = vpop.f32.mrb[0].mxu0
    %v732 = vadd.f32 0.0, %v731
    %v733 = vpop.f32.mrb[0].mxu0
    %734 = vmatprep.mubr.f32.mxu0 0.0
    %735 = vmatmul.mubr.f32.gmra.mrb[0].mxu0 %v543
    %v736 = vpop.f32.mrb[0].mxu0
    %v737 = vadd.f32 0.0, %v736
    %v738 = vpop.f32.mrb[0].mxu0
    %739 = vmatprep.mubr.f32.mxu0 0.0
    %740 = vmatmul.mubr.f32.gmra.mrb[0].mxu0 %v546
    %v741 = vpop.f32.mrb[0].mxu0
    %v742 = vadd.f32 0.0, %v741
    %v743 = vpop.f32.mrb[0].mxu0
    %744 = vmatprep.mubr.f32.mxu0 0.0
    %745 = vmatmul.mubr.f32.gmra.mrb[0].mxu0 %v549
    %v746 = vpop.f32.mrb[0].mxu0
    %v747 = vadd.f32 0.0, %v746
    %v748 = vpop.f32.mrb[0].mxu0
    %749 = vmatprep.mubr.f32.mxu0 0.0
    %750 = vmatmul.mubr.f32.gmra.mrb[0].mxu0 %v552
    %v751 = vpop.f32.mrb[0].mxu0
    %v752 = vadd.f32 0.0, %v751
    %v753 = vpop.f32.mrb[0].mxu0
    %754 = vmatprep.mubr.f32.mxu0 0.0
    %755 = vmatmul.mubr.f32.gmra.mrb[0].mxu0 %v555
    %v756 = vpop.f32.mrb[0].mxu0
    %v757 = vadd.f32 0.0, %v756
    %v758 = vpop.f32.mrb[0].mxu0
    %759 = vmatprep.mubr.f32.mxu0 0.0
    %760 = vmatmul.mubr.f32.gmra.mrb[0].mxu0 %v558
    %v761 = vpop.f32.mrb[0].mxu0
    %v762 = vadd.f32 0.0, %v761
    %v763 = vpop.f32.mrb[0].mxu0
    %764 = vmatprep.mubr.f32.mxu0 0.0
    %765 = vmatmul.mubr.f32.gmra.mrb[0].mxu0 %v561
    %v766 = vpop.f32.mrb[0].mxu0
    %v767 = vadd.f32 0.0, %v766
    %v768 = vpop.f32.mrb[0].mxu0
    %769 = vmatprep.mubr.f32.mxu0 0.0
    %770 = vmatmul.mubr.f32.gmra.mrb[0].mxu0 %v564
    %v771 = vpop.f32.mrb[0].mxu0
    %v772 = vadd.f32 0.0, %v771
    %v773 = vpop.f32.mrb[0].mxu0
    %774 = vmatprep.mubr.f32.mxu0 0.0
    %775 = vmatmul.mubr.f32.gmra.mrb[0].mxu0 %v567
    %v776 = vpop.f32.mrb[0].mxu0
    %v777 = vadd.f32 0.0, %v776
    %v778 = vpop.f32.mrb[0].mxu0
    %779 = vmatprep.mubr.f32.mxu0 0.0
    %780 = vmatmul.mubr.f32.gmra.mrb[0].mxu0 %v570
    %v781 = vpop.f32.mrb[0].mxu0
    %v782 = vadd.f32 0.0, %v781
    %v783 = vpop.f32.mrb[0].mxu0
    %784 = vmatprep.mubr.f32.mxu0 0.0
    %785 = vmatmul.mubr.f32.gmra.mrb[0].mxu0 %v573
    %v786 = vpop.f32.mrb[0].mxu0
    %v787 = vadd.f32 0.0, %v786
    %v788 = vpop.f32.mrb[0].mxu0
    %789 = vmatprep.mubr.f32.mxu0 0.0
    %790 = vmatmul.mubr.f32.gmra.mrb[0].mxu0 %v576
    %v791 = vpop.f32.mrb[0].mxu0
    %v792 = vadd.f32 0.0, %v791
    %v793 = vpop.f32.mrb[0].mxu0
    %794 = vmatprep.mubr.f32.mxu0 0.0
    %795 = vmatmul.mubr.f32.gmra.mrb[0].mxu0 %v579
    %v796 = vpop.f32.mrb[0].mxu0
    %v797 = vadd.f32 0.0, %v796
    %v798 = vpop.f32.mrb[0].mxu0
    %799 = vmatprep.mubr.f32.mxu0 0.0
    %800 = vmatmul.mubr.f32.gmra.mrb[0].mxu0 %v582
    %v801 = vpop.f32.mrb[0].mxu0
    %v802 = vadd.f32 0.0, %v801
    %v803 = vpop.f32.mrb[0].mxu0
    %804 = vmatprep.mubr.f32.mxu0 0.0
    %805 = vmatmul.mubr.f32.gmra.mrb[0].mxu0 %v585
    %v806 = vpop.f32.mrb[0].mxu0
    %v807 = vadd.f32 0.0, %v806
    %v808 = vpop.f32.mrb[0].mxu0
    %809 = vmatprep.mubr.f32.mxu0 0.0
    %810 = vmatmul.mubr.f32.gmra.mrb[0].mxu0 %v588
    %v811 = vpop.f32.mrb[0].mxu0
    %v812 = vadd.f32 0.0, %v811
    %v813 = vpop.f32.mrb[0].mxu0
    %814 = vdwg.mxu0
    %v815 = vld [vmem:[#allocation3] sm:$0xff]
    %v816 = vld [vmem:[#allocation3 + $0x8] sm:$0xff]
    %v817 = vld [vmem:[#allocation3 + $0x10] sm:$0xff]
    %818 = vxpose.xlu0.b32.start [1/16] %v393, 128
    %819 = vxpose.xlu0.b32.cont [2/16] %v395, 128
    %820 = vxpose.xlu0.b32.cont [3/16] %v397, 128
    %821 = vxpose.xlu0.b32.cont [4/16] 0.0, 128
    %822 = vxpose.xlu0.b32.cont [5/16] 0.0, 128
    %823 = vxpose.xlu0.b32.cont [6/16] 0.0, 128
    %824 = vxpose.xlu0.b32.cont [7/16] 0.0, 128
    %825 = vxpose.xlu0.b32.cont [8/16] 0.0, 128
    %826 = vxpose.xlu0.b32.cont [9/16] 0.0, 128
    %827 = vxpose.xlu0.b32.cont [10/16] 0.0, 128
    %828 = vxpose.xlu0.b32.cont [11/16] 0.0, 128
    %829 = vxpose.xlu0.b32.cont [12/16] 0.0, 128
    %830 = vxpose.xlu0.b32.cont [13/16] 0.0, 128
    %831 = vxpose.xlu0.b32.cont [14/16] 0.0, 128
    %832 = vxpose.xlu0.b32.cont [15/16] 0.0, 128
    %833 = vxpose.xlu0.b32.end [16/16] 0.0, 128
    %v834 = vpop.trf.xlu0
    %v835 = vpop.trf.xlu0
    %v836 = vpop.trf.xlu0
    %v837 = vpop.trf.xlu0
    %v838 = vpop.trf.xlu0
    %v839 = vpop.trf.xlu0
    %v840 = vpop.trf.xlu0
    %v841 = vpop.trf.xlu0
    %v842 = vpop.trf.xlu0
    %v843 = vpop.trf.xlu0
    %v844 = vpop.trf.xlu0
    %v845 = vpop.trf.xlu0
    %v846 = vpop.trf.xlu0
    %v847 = vpop.trf.xlu0
    %v848 = vpop.trf.xlu0
    %v849 = vpop.trf.xlu0
    %850 = vxpose.xlu0.b32.start [1/16] %v394, 128
    %851 = vxpose.xlu0.b32.cont [2/16] %v396, 128
    %852 = vxpose.xlu0.b32.cont [3/16] %v398, 128
    %853 = vxpose.xlu0.b32.cont [4/16] 0.0, 128
    %854 = vxpose.xlu0.b32.cont [5/16] 0.0, 128
    %855 = vxpose.xlu0.b32.cont [6/16] 0.0, 128
    %856 = vxpose.xlu0.b32.cont [7/16] 0.0, 128
    %857 = vxpose.xlu0.b32.cont [8/16] 0.0, 128
    %858 = vxpose.xlu0.b32.cont [9/16] 0.0, 128
    %859 = vxpose.xlu0.b32.cont [10/16] 0.0, 128
    %860 = vxpose.xlu0.b32.cont [11/16] 0.0, 128
    %861 = vxpose.xlu0.b32.cont [12/16] 0.0, 128
    %862 = vxpose.xlu0.b32.cont [13/16] 0.0, 128
    %863 = vxpose.xlu0.b32.cont [14/16] 0.0, 128
    %864 = vxpose.xlu0.b32.cont [15/16] 0.0, 128
    %865 = vxpose.xlu0.b32.end [16/16] 0.0, 128
    %v866 = vpop.trf.xlu0
    %v867 = vpop.trf.xlu0
    %v868 = vpop.trf.xlu0
    %v869 = vpop.trf.xlu0
    %v870 = vpop.trf.xlu0
    %v871 = vpop.trf.xlu0
    %v872 = vpop.trf.xlu0
    %v873 = vpop.trf.xlu0
    %v874 = vpop.trf.xlu0
    %v875 = vpop.trf.xlu0
    %v876 = vpop.trf.xlu0
    %v877 = vpop.trf.xlu0
    %v878 = vpop.trf.xlu0
    %v879 = vpop.trf.xlu0
    %v880 = vpop.trf.xlu0
    %v881 = vpop.trf.xlu0
    %vm882 = vcmask 195584
    %v884 = vsel %vm882, %v834, 0
    %v887 = vsel %vm882, %v835, 0
    %v890 = vsel %vm882, %v836, 0
    %v893 = vsel %vm882, %v837, 0
    %v896 = vsel %vm882, %v838, 0
    %v899 = vsel %vm882, %v839, 0
    %v902 = vsel %vm882, %v840, 0
    %v905 = vsel %vm882, %v841, 0
    %v908 = vsel %vm882, %v842, 0
    %v911 = vsel %vm882, %v843, 0
    %v914 = vsel %vm882, %v844, 0
    %v917 = vsel %vm882, %v845, 0
    %v920 = vsel %vm882, %v846, 0
    %v923 = vsel %vm882, %v847, 0
    %v926 = vsel %vm882, %v848, 0
    %v929 = vsel %vm882, %v849, 0
    %v932 = vsel %vm882, %v866, 0
    %v935 = vsel %vm882, %v867, 0
    %v938 = vsel %vm882, %v868, 0
    %v941 = vsel %vm882, %v869, 0
    %v944 = vsel %vm882, %v870, 0
    %v947 = vsel %vm882, %v871, 0
    %v950 = vsel %vm882, %v872, 0
    %v953 = vsel %vm882, %v873, 0
    %v956 = vsel %vm882, %v874, 0
    %v959 = vsel %vm882, %v875, 0
    %v962 = vsel %vm882, %v876, 0
    %v965 = vsel %vm882, %v877, 0
    %v968 = vsel %vm882, %v878, 0
    %v971 = vsel %vm882, %v879, 0
    %v974 = vsel %vm882, %v880, 0
    %v977 = vsel %vm882, %v881, 0
    %979 = vmatprep.subr.mxu0 0.0
    %980 = vmatpush1.msra.mxu0 %v815
    %981 = vmatprep.subr.mxu0 0.0
    %982 = vmatpush1.msra.mxu0 %v816
    %983 = vmatprep.subr.mxu0 0.0
    %984 = vmatpush1.msra.mxu0 %v817
    %985 = vmatprep.subr.mxu0 0.0
    %986 = vmatpush1.msra.mxu0 0.0
    %987 = vmatprep.subr.mxu0 0.0
    %988 = vmatpush1.msra.mxu0 0.0
    %989 = vmatprep.subr.mxu0 0.0
    %990 = vmatpush1.msra.mxu0 0.0
    %991 = vmatprep.subr.mxu0 0.0
    %992 = vmatpush1.msra.mxu0 0.0
    %993 = vmatprep.subr.mxu0 0.0
    %994 = vmatpush1.msra.mxu0 0.0
    %995 = vmatprep.subr.mxu0 0.0
    %996 = vmatpush1.msra.mxu0 0.0
    %997 = vmatprep.subr.mxu0 0.0
    %998 = vmatpush1.msra.mxu0 0.0
    %999 = vmatprep.subr.mxu0 0.0
    %1000 = vmatpush1.msra.mxu0 0.0
    %1001 = vmatprep.subr.mxu0 0.0
    %1002 = vmatpush1.msra.mxu0 0.0
    %1003 = vmatprep.subr.mxu0 0.0
    %1004 = vmatpush1.msra.mxu0 0.0
    %1005 = vmatprep.subr.mxu0 0.0
    %1006 = vmatpush1.msra.mxu0 0.0
    %1007 = vmatprep.subr.mxu0 0.0
    %1008 = vmatpush1.msra.mxu0 0.0
    %1009 = vmatprep.subr.mxu0 0.0
    %1010 = vmatpush1.msra.mxu0 0.0
    %1011 = vmatprep.subr.mxu0 0.0
    %1012 = vmatpush1.msra.mxu0 0.0
    %1013 = vmatprep.subr.mxu0 0.0
    %1014 = vmatpush1.msra.mxu0 0.0
    %1015 = vmatprep.subr.mxu0 0.0
    %1016 = vmatpush1.msra.mxu0 0.0
    %1017 = vmatprep.subr.mxu0 0.0
    %1018 = vmatpush1.msra.mxu0 0.0
    %1019 = vmatprep.subr.mxu0 0.0
    %1020 = vmatpush1.msra.mxu0 0.0
    %1021 = vmatprep.subr.mxu0 0.0
    %1022 = vmatpush1.msra.mxu0 0.0
    %1023 = vmatprep.subr.mxu0 0.0
    %1024 = vmatpush1.msra.mxu0 0.0
    %1025 = vmatprep.subr.mxu0 0.0
    %1026 = vmatpush1.msra.mxu0 0.0
    %1027 = vmatprep.subr.mxu0 0.0
    %1028 = vmatpush1.msra.mxu0 0.0
    %1029 = vmatprep.subr.mxu0 0.0
    %1030 = vmatpush1.msra.mxu0 0.0
    %1031 = vmatprep.subr.mxu0 0.0
    %1032 = vmatpush1.msra.mxu0 0.0
    %1033 = vmatprep.subr.mxu0 0.0
    %1034 = vmatpush1.msra.mxu0 0.0
    %1035 = vmatprep.subr.mxu0 0.0
    %1036 = vmatpush1.msra.mxu0 0.0
    %1037 = vmatprep.subr.mxu0 0.0
    %1038 = vmatpush1.msra.mxu0 0.0
    %1039 = vmatprep.subr.mxu0 0.0
    %1040 = vmatpush1.msra.mxu0 0.0
    %1041 = vmatprep.subr.mxu0 0.0
    %1042 = vmatpush1.msra.mxu0 0.0
    %1043 = vmatprep.mubr.f32.mxu0 0.0
    %1044 = vmatmul.mubr.f32.gmra.mrb[0].mxu0 %v884
    %v1045 = vpop.f32.mrb[0].mxu0
    %v1046 = vadd.f32 0.0, %v1045
    %v1047 = vpop.f32.mrb[0].mxu0
    %1048 = vmatprep.mubr.f32.mxu0 0.0
    %1049 = vmatmul.mubr.f32.gmra.mrb[0].mxu0 %v887
    %v1050 = vpop.f32.mrb[0].mxu0
    %v1051 = vadd.f32 0.0, %v1050
    %v1052 = vpop.f32.mrb[0].mxu0
    %1053 = vmatprep.mubr.f32.mxu0 0.0
    %1054 = vmatmul.mubr.f32.gmra.mrb[0].mxu0 %v890
    %v1055 = vpop.f32.mrb[0].mxu0
    %v1056 = vadd.f32 0.0, %v1055
    %v1057 = vpop.f32.mrb[0].mxu0
    %1058 = vmatprep.mubr.f32.mxu0 0.0
    %1059 = vmatmul.mubr.f32.gmra.mrb[0].mxu0 %v893
    %v1060 = vpop.f32.mrb[0].mxu0
    %v1061 = vadd.f32 0.0, %v1060
    %v1062 = vpop.f32.mrb[0].mxu0
    %1063 = vmatprep.mubr.f32.mxu0 0.0
    %1064 = vmatmul.mubr.f32.gmra.mrb[0].mxu0 %v896
    %v1065 = vpop.f32.mrb[0].mxu0
    %v1066 = vadd.f32 0.0, %v1065
    %v1067 = vpop.f32.mrb[0].mxu0
    %1068 = vmatprep.mubr.f32.mxu0 0.0
    %1069 = vmatmul.mubr.f32.gmra.mrb[0].mxu0 %v899
    %v1070 = vpop.f32.mrb[0].mxu0
    %v1071 = vadd.f32 0.0, %v1070
    %v1072 = vpop.f32.mrb[0].mxu0
    %1073 = vmatprep.mubr.f32.mxu0 0.0
    %1074 = vmatmul.mubr.f32.gmra.mrb[0].mxu0 %v902
    %v1075 = vpop.f32.mrb[0].mxu0
    %v1076 = vadd.f32 0.0, %v1075
    %v1077 = vpop.f32.mrb[0].mxu0
    %1078 = vmatprep.mubr.f32.mxu0 0.0
    %1079 = vmatmul.mubr.f32.gmra.mrb[0].mxu0 %v905
    %v1080 = vpop.f32.mrb[0].mxu0
    %v1081 = vadd.f32 0.0, %v1080
    %v1082 = vpop.f32.mrb[0].mxu0
    %1083 = vmatprep.mubr.f32.mxu0 0.0
    %1084 = vmatmul.mubr.f32.gmra.mrb[0].mxu0 %v908
    %v1085 = vpop.f32.mrb[0].mxu0
    %v1086 = vadd.f32 0.0, %v1085
    %v1087 = vpop.f32.mrb[0].mxu0
    %1088 = vmatprep.mubr.f32.mxu0 0.0
    %1089 = vmatmul.mubr.f32.gmra.mrb[0].mxu0 %v911
    %v1090 = vpop.f32.mrb[0].mxu0
    %v1091 = vadd.f32 0.0, %v1090
    %v1092 = vpop.f32.mrb[0].mxu0
    %1093 = vmatprep.mubr.f32.mxu0 0.0
    %1094 = vmatmul.mubr.f32.gmra.mrb[0].mxu0 %v914
    %v1095 = vpop.f32.mrb[0].mxu0
    %v1096 = vadd.f32 0.0, %v1095
    %v1097 = vpop.f32.mrb[0].mxu0
    %1098 = vmatprep.mubr.f32.mxu0 0.0
    %1099 = vmatmul.mubr.f32.gmra.mrb[0].mxu0 %v917
    %v1100 = vpop.f32.mrb[0].mxu0
    %v1101 = vadd.f32 0.0, %v1100
    %v1102 = vpop.f32.mrb[0].mxu0
    %1103 = vmatprep.mubr.f32.mxu0 0.0
    %1104 = vmatmul.mubr.f32.gmra.mrb[0].mxu0 %v920
    %v1105 = vpop.f32.mrb[0].mxu0
    %v1106 = vadd.f32 0.0, %v1105
    %v1107 = vpop.f32.mrb[0].mxu0
    %1108 = vmatprep.mubr.f32.mxu0 0.0
    %1109 = vmatmul.mubr.f32.gmra.mrb[0].mxu0 %v923
    %v1110 = vpop.f32.mrb[0].mxu0
    %v1111 = vadd.f32 0.0, %v1110
    %v1112 = vpop.f32.mrb[0].mxu0
    %1113 = vmatprep.mubr.f32.mxu0 0.0
    %1114 = vmatmul.mubr.f32.gmra.mrb[0].mxu0 %v926
    %v1115 = vpop.f32.mrb[0].mxu0
    %v1116 = vadd.f32 0.0, %v1115
    %v1117 = vpop.f32.mrb[0].mxu0
    %1118 = vmatprep.mubr.f32.mxu0 0.0
    %1119 = vmatmul.mubr.f32.gmra.mrb[0].mxu0 %v929
    %v1120 = vpop.f32.mrb[0].mxu0
    %v1121 = vadd.f32 0.0, %v1120
    %v1122 = vpop.f32.mrb[0].mxu0
    %1123 = vmatprep.mubr.f32.mxu0 0.0
    %1124 = vmatmul.mubr.f32.gmra.mrb[0].mxu0 %v932
    %v1125 = vpop.f32.mrb[0].mxu0
    %v1126 = vadd.f32 0.0, %v1125
    %v1127 = vpop.f32.mrb[0].mxu0
    %1128 = vmatprep.mubr.f32.mxu0 0.0
    %1129 = vmatmul.mubr.f32.gmra.mrb[0].mxu0 %v935
    %v1130 = vpop.f32.mrb[0].mxu0
    %v1131 = vadd.f32 0.0, %v1130
    %v1132 = vpop.f32.mrb[0].mxu0
    %1133 = vmatprep.mubr.f32.mxu0 0.0
    %1134 = vmatmul.mubr.f32.gmra.mrb[0].mxu0 %v938
    %v1135 = vpop.f32.mrb[0].mxu0
    %v1136 = vadd.f32 0.0, %v1135
    %v1137 = vpop.f32.mrb[0].mxu0
    %1138 = vmatprep.mubr.f32.mxu0 0.0
    %1139 = vmatmul.mubr.f32.gmra.mrb[0].mxu0 %v941
    %v1140 = vpop.f32.mrb[0].mxu0
    %v1141 = vadd.f32 0.0, %v1140
    %v1142 = vpop.f32.mrb[0].mxu0
    %1143 = vmatprep.mubr.f32.mxu0 0.0
    %1144 = vmatmul.mubr.f32.gmra.mrb[0].mxu0 %v944
    %v1145 = vpop.f32.mrb[0].mxu0
    %v1146 = vadd.f32 0.0, %v1145
    %v1147 = vpop.f32.mrb[0].mxu0
    %1148 = vmatprep.mubr.f32.mxu0 0.0
    %1149 = vmatmul.mubr.f32.gmra.mrb[0].mxu0 %v947
    %v1150 = vpop.f32.mrb[0].mxu0
    %v1151 = vadd.f32 0.0, %v1150
    %v1152 = vpop.f32.mrb[0].mxu0
    %1153 = vmatprep.mubr.f32.mxu0 0.0
    %1154 = vmatmul.mubr.f32.gmra.mrb[0].mxu0 %v950
    %v1155 = vpop.f32.mrb[0].mxu0
    %v1156 = vadd.f32 0.0, %v1155
    %v1157 = vpop.f32.mrb[0].mxu0
    %1158 = vmatprep.mubr.f32.mxu0 0.0
    %1159 = vmatmul.mubr.f32.gmra.mrb[0].mxu0 %v953
    %v1160 = vpop.f32.mrb[0].mxu0
    %v1161 = vadd.f32 0.0, %v1160
    %v1162 = vpop.f32.mrb[0].mxu0
    %1163 = vmatprep.mubr.f32.mxu0 0.0
    %1164 = vmatmul.mubr.f32.gmra.mrb[0].mxu0 %v956
    %v1165 = vpop.f32.mrb[0].mxu0
    %v1166 = vadd.f32 0.0, %v1165
    %v1167 = vpop.f32.mrb[0].mxu0
    %1168 = vmatprep.mubr.f32.mxu0 0.0
    %1169 = vmatmul.mubr.f32.gmra.mrb[0].mxu0 %v959
    %v1170 = vpop.f32.mrb[0].mxu0
    %v1171 = vadd.f32 0.0, %v1170
    %v1172 = vpop.f32.mrb[0].mxu0
    %1173 = vmatprep.mubr.f32.mxu0 0.0
    %1174 = vmatmul.mubr.f32.gmra.mrb[0].mxu0 %v962
    %v1175 = vpop.f32.mrb[0].mxu0
    %v1176 = vadd.f32 0.0, %v1175
    %v1177 = vpop.f32.mrb[0].mxu0
    %1178 = vmatprep.mubr.f32.mxu0 0.0
    %1179 = vmatmul.mubr.f32.gmra.mrb[0].mxu0 %v965
    %v1180 = vpop.f32.mrb[0].mxu0
    %v1181 = vadd.f32 0.0, %v1180
    %v1182 = vpop.f32.mrb[0].mxu0
    %1183 = vmatprep.mubr.f32.mxu0 0.0
    %1184 = vmatmul.mubr.f32.gmra.mrb[0].mxu0 %v968
    %v1185 = vpop.f32.mrb[0].mxu0
    %v1186 = vadd.f32 0.0, %v1185
    %v1187 = vpop.f32.mrb[0].mxu0
    %1188 = vmatprep.mubr.f32.mxu0 0.0
    %1189 = vmatmul.mubr.f32.gmra.mrb[0].mxu0 %v971
    %v1190 = vpop.f32.mrb[0].mxu0
    %v1191 = vadd.f32 0.0, %v1190
    %v1192 = vpop.f32.mrb[0].mxu0
    %1193 = vmatprep.mubr.f32.mxu0 0.0
    %1194 = vmatmul.mubr.f32.gmra.mrb[0].mxu0 %v974
    %v1195 = vpop.f32.mrb[0].mxu0
    %v1196 = vadd.f32 0.0, %v1195
    %v1197 = vpop.f32.mrb[0].mxu0
    %1198 = vmatprep.mubr.f32.mxu0 0.0
    %1199 = vmatmul.mubr.f32.gmra.mrb[0].mxu0 %v977
    %v1200 = vpop.f32.mrb[0].mxu0
    %v1201 = vadd.f32 0.0, %v1200
    %v1202 = vpop.f32.mrb[0].mxu0
    %1203 = vdwg.mxu0
    %v1204 = vld [vmem:[#allocation4] sm:$0xff]
    %v1205 = vld [vmem:[#allocation4 + $0x8] sm:$0xff]
    %1206 = vmatprep.subr.mxu0 0.0
    %1207 = vmatpush1.msra.mxu0 %v1046
    %1208 = vmatprep.subr.mxu0 0.0
    %1209 = vmatpush1.msra.mxu0 %v1051
    %1210 = vmatprep.subr.mxu0 0.0
    %1211 = vmatpush1.msra.mxu0 %v1056
    %1212 = vmatprep.subr.mxu0 0.0
    %1213 = vmatpush1.msra.mxu0 %v1061
    %1214 = vmatprep.subr.mxu0 0.0
    %1215 = vmatpush1.msra.mxu0 %v1066
    %1216 = vmatprep.subr.mxu0 0.0
    %1217 = vmatpush1.msra.mxu0 %v1071
    %1218 = vmatprep.subr.mxu0 0.0
    %1219 = vmatpush1.msra.mxu0 %v1076
    %1220 = vmatprep.subr.mxu0 0.0
    %1221 = vmatpush1.msra.mxu0 %v1081
    %1222 = vmatprep.subr.mxu0 0.0
    %1223 = vmatpush1.msra.mxu0 %v1086
    %1224 = vmatprep.subr.mxu0 0.0
    %1225 = vmatpush1.msra.mxu0 %v1091
    %1226 = vmatprep.subr.mxu0 0.0
    %1227 = vmatpush1.msra.mxu0 %v1096
    %1228 = vmatprep.subr.mxu0 0.0
    %1229 = vmatpush1.msra.mxu0 %v1101
    %1230 = vmatprep.subr.mxu0 0.0
    %1231 = vmatpush1.msra.mxu0 %v1106
    %1232 = vmatprep.subr.mxu0 0.0
    %1233 = vmatpush1.msra.mxu0 %v1111
    %1234 = vmatprep.subr.mxu0 0.0
    %1235 = vmatpush1.msra.mxu0 %v1116
    %1236 = vmatprep.subr.mxu0 0.0
    %1237 = vmatpush1.msra.mxu0 %v1121
    %1238 = vmatprep.subr.mxu0 0.0
    %1239 = vmatpush1.msra.mxu0 %v1126
    %1240 = vmatprep.subr.mxu0 0.0
    %1241 = vmatpush1.msra.mxu0 %v1131
    %1242 = vmatprep.subr.mxu0 0.0
    %1243 = vmatpush1.msra.mxu0 %v1136
    %1244 = vmatprep.subr.mxu0 0.0
    %1245 = vmatpush1.msra.mxu0 %v1141
    %1246 = vmatprep.subr.mxu0 0.0
    %1247 = vmatpush1.msra.mxu0 %v1146
    %1248 = vmatprep.subr.mxu0 0.0
    %1249 = vmatpush1.msra.mxu0 %v1151
    %1250 = vmatprep.subr.mxu0 0.0
    %1251 = vmatpush1.msra.mxu0 %v1156
    %1252 = vmatprep.subr.mxu0 0.0
    %1253 = vmatpush1.msra.mxu0 %v1161
    %1254 = vmatprep.subr.mxu0 0.0
    %1255 = vmatpush1.msra.mxu0 %v1166
    %1256 = vmatprep.subr.mxu0 0.0
    %1257 = vmatpush1.msra.mxu0 %v1171
    %1258 = vmatprep.subr.mxu0 0.0
    %1259 = vmatpush1.msra.mxu0 %v1176
    %1260 = vmatprep.subr.mxu0 0.0
    %1261 = vmatpush1.msra.mxu0 %v1181
    %1262 = vmatprep.subr.mxu0 0.0
    %1263 = vmatpush1.msra.mxu0 %v1186
    %1264 = vmatprep.subr.mxu0 0.0
    %1265 = vmatpush1.msra.mxu0 %v1191
    %1266 = vmatprep.subr.mxu0 0.0
    %1267 = vmatpush1.msra.mxu0 %v1196
    %1268 = vmatprep.subr.mxu0 0.0
    %1269 = vmatpush1.msra.mxu0 %v1201
    %1270 = vmatprep.mubr.f32.mxu0 %v424
    %1271 = vmatmul.mubr.f32.gmra.mrb[0].mxu0 %v423
    %v1272 = vpop.f32.mrb[0].mxu0
    %v1273 = vadd.f32 0.0, %v1272
    %v1274 = vpop.f32.mrb[0].mxu0
    %1275 = vmatprep.mubr.f32.mxu0 %v426
    %1276 = vmatmul.mubr.f32.gmra.mrb[0].mxu0 %v425
    %v1277 = vpop.f32.mrb[0].mxu0
    %v1278 = vadd.f32 0.0, %v1277
    %v1279 = vpop.f32.mrb[0].mxu0
    %1280 = vdwg.mxu0
    %1281 = vmatprep.subr.mxu0 0.0
    %1282 = vmatpush1.msra.mxu0 %v657
    %1283 = vmatprep.subr.mxu0 0.0
    %1284 = vmatpush1.msra.mxu0 %v662
    %1285 = vmatprep.subr.mxu0 0.0
    %1286 = vmatpush1.msra.mxu0 %v667
    %1287 = vmatprep.subr.mxu0 0.0
    %1288 = vmatpush1.msra.mxu0 %v672
    %1289 = vmatprep.subr.mxu0 0.0
    %1290 = vmatpush1.msra.mxu0 %v677
    %1291 = vmatprep.subr.mxu0 0.0
    %1292 = vmatpush1.msra.mxu0 %v682
    %1293 = vmatprep.subr.mxu0 0.0
    %1294 = vmatpush1.msra.mxu0 %v687
    %1295 = vmatprep.subr.mxu0 0.0
    %1296 = vmatpush1.msra.mxu0 %v692
    %1297 = vmatprep.subr.mxu0 0.0
    %1298 = vmatpush1.msra.mxu0 %v697
    %1299 = vmatprep.subr.mxu0 0.0
    %1300 = vmatpush1.msra.mxu0 %v702
    %1301 = vmatprep.subr.mxu0 0.0
    %1302 = vmatpush1.msra.mxu0 %v707
    %1303 = vmatprep.subr.mxu0 0.0
    %1304 = vmatpush1.msra.mxu0 %v712
    %1305 = vmatprep.subr.mxu0 0.0
    %1306 = vmatpush1.msra.mxu0 %v717
    %1307 = vmatprep.subr.mxu0 0.0
    %1308 = vmatpush1.msra.mxu0 %v722
    %1309 = vmatprep.subr.mxu0 0.0
    %1310 = vmatpush1.msra.mxu0 %v727
    %1311 = vmatprep.subr.mxu0 0.0
    %1312 = vmatpush1.msra.mxu0 %v732
    %1313 = vmatprep.subr.mxu0 0.0
    %1314 = vmatpush1.msra.mxu0 %v737
    %1315 = vmatprep.subr.mxu0 0.0
    %1316 = vmatpush1.msra.mxu0 %v742
    %1317 = vmatprep.subr.mxu0 0.0
    %1318 = vmatpush1.msra.mxu0 %v747
    %1319 = vmatprep.subr.mxu0 0.0
    %1320 = vmatpush1.msra.mxu0 %v752
    %1321 = vmatprep.subr.mxu0 0.0
    %1322 = vmatpush1.msra.mxu0 %v757
    %1323 = vmatprep.subr.mxu0 0.0
    %1324 = vmatpush1.msra.mxu0 %v762
    %1325 = vmatprep.subr.mxu0 0.0
    %1326 = vmatpush1.msra.mxu0 %v767
    %1327 = vmatprep.subr.mxu0 0.0
    %1328 = vmatpush1.msra.mxu0 %v772
    %1329 = vmatprep.subr.mxu0 0.0
    %1330 = vmatpush1.msra.mxu0 %v777
    %1331 = vmatprep.subr.mxu0 0.0
    %1332 = vmatpush1.msra.mxu0 %v782
    %1333 = vmatprep.subr.mxu0 0.0
    %1334 = vmatpush1.msra.mxu0 %v787
    %1335 = vmatprep.subr.mxu0 0.0
    %1336 = vmatpush1.msra.mxu0 %v792
    %1337 = vmatprep.subr.mxu0 0.0
    %1338 = vmatpush1.msra.mxu0 %v797
    %1339 = vmatprep.subr.mxu0 0.0
    %1340 = vmatpush1.msra.mxu0 %v802
    %1341 = vmatprep.subr.mxu0 0.0
    %1342 = vmatpush1.msra.mxu0 %v807
    %1343 = vmatprep.subr.mxu0 0.0
    %1344 = vmatpush1.msra.mxu0 %v812
    %1345 = vmatprep.mubr.f32.mxu0 %v362
    %1346 = vmatmul.mubr.f32.gmra.mrb[0].mxu0 %v361
    %v1347 = vpop.f32.mrb[0].mxu0
    %v1348 = vadd.f32 %v1273, %v1347
    %v1349 = vpop.f32.mrb[0].mxu0
    %1350 = vmatprep.mubr.f32.mxu0 %v364
    %1351 = vmatmul.mubr.f32.gmra.mrb[0].mxu0 %v363
    %v1352 = vpop.f32.mrb[0].mxu0
    %v1353 = vadd.f32 %v1278, %v1352
    %v1354 = vpop.f32.mrb[0].mxu0
    %1355 = vdwg.mxu0
    %v1356 = vadd.f32 %v1204, %v1348
    %v1357 = vadd.f32 %v1205, %v1353
    %1358 = vst [vmem:[#allocation4] sm:$0xff] %v1356
    %1359 = vst [vmem:[#allocation4 + $0x8] sm:$0xff] %v1357
    // Predicated region
    $region34: #{tpu_custom_call.1} parent=1 // pred_check
      %p1360 = pneg %p27
    $region35: #{tpu_custom_call.1} parent=1 // pred_check_branch
      %1362 = sbr.rel (%p1360) target = $region37
    $region36: #{tpu_custom_call.1} parent=1 // pred_region
      %v1363 = vld [vmem:[#allocation4] sm:$0xff]
      %v1364 = vld [vmem:[#allocation4 + $0x8] sm:$0xff]
      %v1365 = vmul.f32 %v1363, %v1363
      %v1366 = vmul.f32 %v1364, %v1364
      %1367 = vadd.xlane.f32.xlu0 %v1365
      %v1368 = vpop.xlane.xlu0 %1367
      %1369 = vadd.xlane.f32.xlu0 %v1366
      %v1370 = vpop.xlane.xlu0 %1369
      %v1371 = vmax.f32 %v1368, 1e-24
      %v1372 = vmax.f32 %v1370, 1e-24
      %v1373 = vrsqrt.pop %v1371
      %v1374 = vrsqrt.pop %v1372
      %v1375 = vmul.f32 %v1363, %v1373
      %v1376 = vmul.f32 %v1364, %v1374
      %vm1377 = vcmp.ge.f32.partialorder %v1375, 0.0
      %vm1378 = vcmp.ge.f32.partialorder %v1376, 0.0
      %v1379 = vmul.f32 %v1375, 0.01
      %v1380 = vmul.f32 %v1376, 0.01
      %v1381 = vsel %vm1377, %v1375, %v1379
      %v1382 = vsel %vm1378, %v1376, %v1380
      %1383 = vst [vmem:[#allocation5] sm:$0xff] %v1381
      %1384 = vst [vmem:[#allocation5 + $0x8] sm:$0xff] %v1382
    $region37: #{tpu_custom_call.1} parent=1 // pred_fallthru
      _
    // Predicated region
    $region38: #{tpu_custom_call.1} parent=1 // pred_check
      _
    $region39: #{tpu_custom_call.1} parent=1 // pred_check_branch
      %1386 = sbr.rel (0) target = $region41
    $region40: #{tpu_custom_call.1} parent=1 // pred_region
      %s1388 = ssub.s32 256, 256
      %1389 = vsyncadd [#allocation6], %s1388
      %s1390 = sshll.u32 [#allocation5], 4
      %s1391 = int_to_ptr.vmem [resolvable:$true] %s1390
      %1396 = dma.vmem_to_hbm [thread:$0]  %s1391, 256, %s7, [#allocation6], 128, 128, 8
    $region41: #{tpu_custom_call.1} parent=1 // pred_fallthru
      _
    // Predicated region
    $region42: #{tpu_custom_call.1} parent=1 // pred_check
      _
    $region43: #{tpu_custom_call.1} parent=1 // pred_check_branch
      %1398 = sbr.rel (0) target = $region45
    $region44: #{tpu_custom_call.1} parent=1 // pred_region
      %1399 = dma.done [#allocation6], 256
    $region45: #{tpu_custom_call.1} parent=1 // pred_fallthru
      _
    %1400 = vsyncpa [#allocation6], 1

</llo_original>
